<compile_context>
chip_gen: v7x
topology: tpu7x:2x2x1
jax: 0.10.0
libtpu: 0.0.40
codegen_flags: <defaults>
</compile_context>

<pallas_src>
import functools

import jax
import jax.numpy as jnp
from jax.experimental import pallas as pl
from jax.experimental.pallas import tpu as pltpu

NEG_SLOPE = 0.01        # nn.LeakyReLU default (base_activation)
GRID_SIZE = 4
SPLINE_ORDER = 2
LANE = 128              # feature-chunk width (vreg lane width)


def _round_up(a, m):
    return (a + m - 1) // m * m


# ----------------------------------------------------------------------------
# Fused Pallas kernel: whole KAN forward in one call
# ----------------------------------------------------------------------------
def kan_fused_kernel(*refs, grid_size, spline_order, neg_slope):
    """refs = (x_ref, kp_ref_0, w_ref_0, kp_ref_1, w_ref_1, ..., out_ref)

    x_ref:    (TB, in_pad_0)                               lane-padded input
    kp_ref_l: (G + sum_{k=1..so}(G-k), in_pad_l)           rows 0..G-1 = knots,
              then 1/(g[j+k]-g[j]) reciprocal rows for k = 1..spline_order
              (padded feature columns carry 0.0).
    w_ref_l:  ((K+1)*in_pad_l, out_pad_l)                  [base_w.T ; scaled
              spline weights, basis-major], zero-padded rows/cols.
    out_ref:  (TB, out_pad_last)
    """
    x_ref = refs[0]
    out_ref = refs[-1]
    n_layers = (len(refs) - 2) // 2
    G = grid_size + 2 * spline_order + 1          # knots per feature

    h = x_ref[...].astype(jnp.float32)
    for l in range(n_layers):
        kp = refs[1 + 2 * l][...]                 # (rows, in_pad) small VMEM load
        w_ref = refs[2 + 2 * l]                   # ((K+1)*in_pad, out_pad)
        in_pad = kp.shape[1]
        out_pad = w_ref.shape[1]
        tb = h.shape[0]

        acc = jnp.zeros((tb, out_pad), jnp.float32)
        n_chunks = in_pad // LANE
        # Static chunk loop over 128-wide feature columns: basis math is purely
        # per-feature, so live temporaries stay O(TB x 128) regardless of in_l.
        for c in range(n_chunks):
            lo = c * LANE
            hc = h[:, lo:lo + LANE]                          # (TB, 128)

            # hoist knot rows once per chunk (JAX does not CSE slices/bcasts)
            kn = [kp[j:j + 1, lo:lo + LANE] for j in range(G)]   # each (1, 128)

            # base path: leaky relu -> accumulate into acc via MXU
            xa = jnp.maximum(hc, neg_slope * hc)
            acc = acc + jnp.dot(xa, w_ref[lo:lo + LANE, :],
                                preferred_element_type=jnp.float32)

            # order-0 bases from monotone >= compares: b_j = ge_j - ge_{j+1}
            ge = [(hc >= kn[j]).astype(jnp.float32) for j in range(G)]
            b = [ge[j] - ge[j + 1] for j in range(G - 1)]

            # shared-alpha Cox-de Boor recursion with precomputed reciprocals
            off = G
            for k in range(1, spline_order + 1):
                n = G - k
                alpha = [(hc - kn[j]) * kp[off + j:off + j + 1, lo:lo + LANE]
                         for j in range(n)]
                b = [alpha[j] * b[j] + (1.0 - alpha[j + 1]) * b[j + 1]
                     for j in range(n - 1)]
                off += n

            # accumulate each final-order basis against its weight row block
            for j, bj in enumerate(b):
                r0 = (j + 1) * in_pad + lo
                acc = acc + jnp.dot(bj, w_ref[r0:r0 + LANE, :],
                                    preferred_element_type=jnp.float32)
        h = acc

    out_ref[...] = h.astype(out_ref.dtype)


# ----------------------------------------------------------------------------
# Constant (per-weight) preparation -- run ONCE, outside the forward path
# ----------------------------------------------------------------------------
def prepare_kan_params(params, lane=LANE):
    """Fold scaler into spline weights, stack base+spline basis-major, lane-pad
    everything to multiples of 128, transpose knots and precompute Cox-de Boor
    reciprocals (padded columns get 0.0, never 1/(g-g)). Returns (kps, ws)."""
    kps, ws = [], []
    for lp in params:
        base_w = lp["base_w"]                                      # (out, in)
        out_f, in_f = base_w.shape
        in_pad = _round_up(in_f, lane)
        out_pad = _round_up(out_f, lane)

        scaled = lp["spline_w"] * lp["spline_scaler"][:, :, None]  # (out, in, K)
        K = scaled.shape[-1]
        blocks = [base_w.T] + [scaled[:, :, j].T for j in range(K)]
        blocks = [jnp.pad(blk, ((0, in_pad - in_f), (0, out_pad - out_f)))
                  for blk in blocks]
        w_full = jnp.concatenate(blocks, axis=0)                   # ((K+1)*in_pad, out_pad)

        g = lp["grid"]                                             # (in, G)
        parts = [g]
        for k in range(1, SPLINE_ORDER + 1):
            parts.append(1.0 / (g[:, k:] - g[:, :-k]))             # (in, G-k)
        kp = jnp.concatenate(parts, axis=1).T                      # (rows, in)
        kp = jnp.pad(kp, ((0, 0), (0, in_pad - in_f)))             # zero-pad cols

        kps.append(kp.astype(jnp.float32))
        ws.append(w_full.astype(jnp.float32))
    return tuple(kps), tuple(ws)


# ----------------------------------------------------------------------------
# Wrapper: one pallas_call for the whole network, batch as a parallel grid axis
# ----------------------------------------------------------------------------
def _pick_batch_tile(batch):
    # Prefer 256-row tiles (fills a 256-deep MXU slab, keeps per-chunk live
    # temporaries modest); small batches use a single 8-aligned tile.
    # TODO(synk): prefer 128 on v5e; ensure >= 2 grid steps on v7x (2 TCs).
    return min(256, _round_up(batch, 8))


def kan_forward(x, kps, ws, *, out_features):
    B, in0 = x.shape
    in0_pad = kps[0].shape[1]
    out_pad = ws[-1].shape[1]

    tb = _pick_batch_tile(B)
    Bp = _round_up(B, tb)
    xp = jnp.pad(x.astype(jnp.float32), ((0, Bp - B), (0, in0_pad - in0)))

    args = [xp]
    in_specs = [pl.BlockSpec((tb, in0_pad), lambda i: (i, 0))]
    for kp, w in zip(kps, ws):
        args += [kp, w]
        in_specs.append(pl.BlockSpec(kp.shape, lambda i: (0, 0)))
        in_specs.append(pl.BlockSpec(w.shape, lambda i: (0, 0)))

    kern = functools.partial(kan_fused_kernel,
                             grid_size=GRID_SIZE,
                             spline_order=SPLINE_ORDER,
                             neg_slope=NEG_SLOPE)
    out = pl.pallas_call(
        kern,
        out_shape=jax.ShapeDtypeStruct((Bp, out_pad), jnp.float32),
        grid=(Bp // tb,),
        in_specs=in_specs,
        out_specs=pl.BlockSpec((tb, out_pad), lambda i: (i, 0)),
        compiler_params=pltpu.CompilerParams(
            dimension_semantics=("parallel",)),
    )(*args)
    return out[:B, :out_features]


# ----------------------------------------------------------------------------
# Pure-JAX reference (mirrors the PyTorch code literally) for verification
# ----------------------------------------------------------------------------
def kan_linear_ref(x, lp):
    base_w, spline_w, scaler, g = (lp["base_w"], lp["spline_w"],
                                   lp["spline_scaler"], lp["grid"])
    xa = jnp.where(x >= 0, x, NEG_SLOPE * x)
    base = xa @ base_w.T
    xe = x[:, :, None]
    bases = ((xe >= g[None, :, :-1]) & (xe < g[None, :, 1:])).astype(x.dtype)
    for k in range(1, SPLINE_ORDER + 1):
        bases = ((xe - g[None, :, :-(k + 1)])
                 / (g[None, :, k:-1] - g[None, :, :-(k + 1)]) * bases[:, :, :-1]
                 + (g[None, :, k + 1:] - xe)
                 / (g[None, :, k + 1:] - g[None, :, 1:-k]) * bases[:, :, 1:])
    scaled = spline_w * scaler[:, :, None]
    spline = bases.reshape(x.shape[0], -1) @ scaled.reshape(scaled.shape[0], -1).T
    return base + spline


def kan_ref(x, params):
    h = x
    for lp in params:
        h = kan_linear_ref(h, lp)
    return h


# ----------------------------------------------------------------------------
# Deterministic synthetic parameters (forward-pass shapes only; the PyTorch
# lstsq-based init is an init-time detail, not part of forward).
# ----------------------------------------------------------------------------
def make_kan_linear_params(key, in_f, out_f):
    k1, k2, k3 = jax.random.split(key, 3)
    h = 2.0 / GRID_SIZE
    knots = jnp.arange(-SPLINE_ORDER, GRID_SIZE + SPLINE_ORDER + 1,
                       dtype=jnp.float32) * h - 1.0
    return dict(
        base_w=jax.random.normal(k1, (out_f, in_f), jnp.float32) / jnp.sqrt(in_f),
        spline_w=jax.random.normal(k2, (out_f, in_f, GRID_SIZE + SPLINE_ORDER),
                                   jnp.float32) * 0.1,
        spline_scaler=jax.random.normal(k3, (out_f, in_f), jnp.float32)
        / jnp.sqrt(in_f),
        grid=jnp.broadcast_to(knots, (in_f, knots.shape[0])).astype(jnp.float32),
    )


def make_params(key, layers_hidden):
    keys = jax.random.split(key, len(layers_hidden) - 1)
    return [make_kan_linear_params(k, i, o)
            for k, (i, o) in zip(keys, zip(layers_hidden[:-1], layers_hidden[1:]))]


# ----------------------------------------------------------------------------
if __name__ == "__main__":
    key = jax.random.PRNGKey(0)
    kparams, kx = jax.random.split(key)

    B = 8
    LAYERS_HIDDEN = [64, 128, 32]       # KAN([in, 128, hidden]) style, small shapes

    params = make_params(kparams, LAYERS_HIDDEN)
    x = jax.random.normal(kx, (B, LAYERS_HIDDEN[0]), jnp.float32)

    # Constant weight/knot math hoisted out of the per-call path (one-time).
    kps, ws = prepare_kan_params(params)
    kps = jax.block_until_ready(kps)
    ws = jax.block_until_ready(ws)

    fwd = jax.jit(kan_forward, static_argnames=("out_features",))
    out = jax.block_until_ready(fwd(x, kps, ws, out_features=LAYERS_HIDDEN[-1]))
    assert out.shape == (B, LAYERS_HIDDEN[-1]) and out.dtype == jnp.float32

    ref = kan_ref(x, params)
    assert jnp.allclose(out, ref, rtol=2e-3, atol=2e-3), \
        f"max abs err {jnp.max(jnp.abs(out - ref))}"

    print("KERNEL_OK")
</pallas_src>

<mosaic_0001>
module attributes {stable_mosaic.version = 11 : i64} {
  func.func @kan_fused_kernel(%arg0: i32, %arg1: memref<8x128xf32, #tpu.memory_space<vmem>>, %arg2: memref<24x128xf32, #tpu.memory_space<vmem>>, %arg3: memref<896x128xf32, #tpu.memory_space<vmem>>, %arg4: memref<24x128xf32, #tpu.memory_space<vmem>>, %arg5: memref<896x128xf32, #tpu.memory_space<vmem>>, %arg6: memref<8x128xf32, #tpu.memory_space<vmem>>) attributes {dimension_semantics = [#tpu.dimension_semantics<parallel>], iteration_bounds = array<i64: 1>, scalar_prefetch = 0 : i64, scratch_operands = 0 : i64, tpu.core_type = #tpu.core_type<tc>, window_params = [{transform_indices = @transform_0, window_bounds = array<i64: 8, 128>}, {pipeline_mode = #tpu.pipeline_mode<synchronous>, transform_indices = @transform_1, window_bounds = array<i64: 24, 128>}, {pipeline_mode = #tpu.pipeline_mode<synchronous>, transform_indices = @transform_2, window_bounds = array<i64: 896, 128>}, {pipeline_mode = #tpu.pipeline_mode<synchronous>, transform_indices = @transform_3, window_bounds = array<i64: 24, 128>}, {pipeline_mode = #tpu.pipeline_mode<synchronous>, transform_indices = @transform_4, window_bounds = array<i64: 896, 128>}, {transform_indices = @transform_5, window_bounds = array<i64: 8, 128>}]} {
    %c0 = arith.constant 0 : index
    %c0_0 = arith.constant 0 : index
    %0 = vector.load %arg1[%c0, %c0_0] : memref<8x128xf32, #tpu.memory_space<vmem>>, vector<8x128xf32>
    %c0_1 = arith.constant 0 : index
    %c0_2 = arith.constant 0 : index
    %1 = vector.load %arg2[%c0_1, %c0_2] : memref<24x128xf32, #tpu.memory_space<vmem>>, vector<24x128xf32>
    %cst = arith.constant 0.000000e+00 : f32
    %2 = vector.broadcast %cst : f32 to vector<8x128xf32>
    %3 = vector.extract_strided_slice %1 {offsets = [0, 0], sizes = [1, 128], strides = [1, 1]} : vector<24x128xf32> to vector<1x128xf32>
    %4 = vector.extract_strided_slice %1 {offsets = [1, 0], sizes = [1, 128], strides = [1, 1]} : vector<24x128xf32> to vector<1x128xf32>
    %5 = vector.extract_strided_slice %1 {offsets = [2, 0], sizes = [1, 128], strides = [1, 1]} : vector<24x128xf32> to vector<1x128xf32>
    %6 = vector.extract_strided_slice %1 {offsets = [3, 0], sizes = [1, 128], strides = [1, 1]} : vector<24x128xf32> to vector<1x128xf32>
    %7 = vector.extract_strided_slice %1 {offsets = [4, 0], sizes = [1, 128], strides = [1, 1]} : vector<24x128xf32> to vector<1x128xf32>
    %8 = vector.extract_strided_slice %1 {offsets = [5, 0], sizes = [1, 128], strides = [1, 1]} : vector<24x128xf32> to vector<1x128xf32>
    %9 = vector.extract_strided_slice %1 {offsets = [6, 0], sizes = [1, 128], strides = [1, 1]} : vector<24x128xf32> to vector<1x128xf32>
    %10 = vector.extract_strided_slice %1 {offsets = [7, 0], sizes = [1, 128], strides = [1, 1]} : vector<24x128xf32> to vector<1x128xf32>
    %11 = vector.extract_strided_slice %1 {offsets = [8, 0], sizes = [1, 128], strides = [1, 1]} : vector<24x128xf32> to vector<1x128xf32>
    %cst_3 = arith.constant 0.00999999977 : f32
    %12 = vector.broadcast %cst_3 : f32 to vector<8x128xf32>
    %13 = arith.mulf %12, %0 : vector<8x128xf32>
    %14 = arith.maximumf %0, %13 : vector<8x128xf32>
    %c0_4 = arith.constant 0 : index
    %c0_5 = arith.constant 0 : index
    %15 = vector.load %arg3[%c0_4, %c0_5] : memref<896x128xf32, #tpu.memory_space<vmem>>, vector<128x128xf32>
    %cst_6 = arith.constant dense<0.000000e+00> : vector<8x128xf32>
    %16 = tpu.matmul %14, %15, %cst_6 {dimension_numbers = #tpu.dot_dimension_numbers<[1], [0], [0], [1], [0, 0, 1, 1], [], []>} : vector<8x128xf32>, vector<128x128xf32>, vector<8x128xf32> -> vector<8x128xf32>
    %17 = arith.addf %2, %16 : vector<8x128xf32>
    %18 = vector.broadcast %3 : vector<1x128xf32> to vector<8x128xf32>
    %19 = arith.cmpf oge, %0, %18 : vector<8x128xf32>
    %20 = arith.extui %19 : vector<8x128xi1> to vector<8x128xi32>
    %21 = arith.sitofp %20 : vector<8x128xi32> to vector<8x128xf32>
    %22 = vector.broadcast %4 : vector<1x128xf32> to vector<8x128xf32>
    %23 = arith.cmpf oge, %0, %22 : vector<8x128xf32>
    %24 = arith.extui %23 : vector<8x128xi1> to vector<8x128xi32>
    %25 = arith.sitofp %24 : vector<8x128xi32> to vector<8x128xf32>
    %26 = vector.broadcast %5 : vector<1x128xf32> to vector<8x128xf32>
    %27 = arith.cmpf oge, %0, %26 : vector<8x128xf32>
    %28 = arith.extui %27 : vector<8x128xi1> to vector<8x128xi32>
    %29 = arith.sitofp %28 : vector<8x128xi32> to vector<8x128xf32>
    %30 = vector.broadcast %6 : vector<1x128xf32> to vector<8x128xf32>
    %31 = arith.cmpf oge, %0, %30 : vector<8x128xf32>
    %32 = arith.extui %31 : vector<8x128xi1> to vector<8x128xi32>
    %33 = arith.sitofp %32 : vector<8x128xi32> to vector<8x128xf32>
    %34 = vector.broadcast %7 : vector<1x128xf32> to vector<8x128xf32>
    %35 = arith.cmpf oge, %0, %34 : vector<8x128xf32>
    %36 = arith.extui %35 : vector<8x128xi1> to vector<8x128xi32>
    %37 = arith.sitofp %36 : vector<8x128xi32> to vector<8x128xf32>
    %38 = vector.broadcast %8 : vector<1x128xf32> to vector<8x128xf32>
    %39 = arith.cmpf oge, %0, %38 : vector<8x128xf32>
    %40 = arith.extui %39 : vector<8x128xi1> to vector<8x128xi32>
    %41 = arith.sitofp %40 : vector<8x128xi32> to vector<8x128xf32>
    %42 = vector.broadcast %9 : vector<1x128xf32> to vector<8x128xf32>
    %43 = arith.cmpf oge, %0, %42 : vector<8x128xf32>
    %44 = arith.extui %43 : vector<8x128xi1> to vector<8x128xi32>
    %45 = arith.sitofp %44 : vector<8x128xi32> to vector<8x128xf32>
    %46 = vector.broadcast %10 : vector<1x128xf32> to vector<8x128xf32>
    %47 = arith.cmpf oge, %0, %46 : vector<8x128xf32>
    %48 = arith.extui %47 : vector<8x128xi1> to vector<8x128xi32>
    %49 = arith.sitofp %48 : vector<8x128xi32> to vector<8x128xf32>
    %50 = vector.broadcast %11 : vector<1x128xf32> to vector<8x128xf32>
    %51 = arith.cmpf oge, %0, %50 : vector<8x128xf32>
    %52 = arith.extui %51 : vector<8x128xi1> to vector<8x128xi32>
    %53 = arith.sitofp %52 : vector<8x128xi32> to vector<8x128xf32>
    %54 = arith.subf %21, %25 : vector<8x128xf32>
    %55 = arith.subf %25, %29 : vector<8x128xf32>
    %56 = arith.subf %29, %33 : vector<8x128xf32>
    %57 = arith.subf %33, %37 : vector<8x128xf32>
    %58 = arith.subf %37, %41 : vector<8x128xf32>
    %59 = arith.subf %41, %45 : vector<8x128xf32>
    %60 = arith.subf %45, %49 : vector<8x128xf32>
    %61 = arith.subf %49, %53 : vector<8x128xf32>
    %62 = vector.broadcast %3 : vector<1x128xf32> to vector<8x128xf32>
    %63 = arith.subf %0, %62 : vector<8x128xf32>
    %64 = vector.extract_strided_slice %1 {offsets = [9, 0], sizes = [1, 128], strides = [1, 1]} : vector<24x128xf32> to vector<1x128xf32>
    %65 = vector.broadcast %64 : vector<1x128xf32> to vector<8x128xf32>
    %66 = arith.mulf %63, %65 : vector<8x128xf32>
    %67 = vector.broadcast %4 : vector<1x128xf32> to vector<8x128xf32>
    %68 = arith.subf %0, %67 : vector<8x128xf32>
    %69 = vector.extract_strided_slice %1 {offsets = [10, 0], sizes = [1, 128], strides = [1, 1]} : vector<24x128xf32> to vector<1x128xf32>
    %70 = vector.broadcast %69 : vector<1x128xf32> to vector<8x128xf32>
    %71 = arith.mulf %68, %70 : vector<8x128xf32>
    %72 = vector.broadcast %5 : vector<1x128xf32> to vector<8x128xf32>
    %73 = arith.subf %0, %72 : vector<8x128xf32>
    %74 = vector.extract_strided_slice %1 {offsets = [11, 0], sizes = [1, 128], strides = [1, 1]} : vector<24x128xf32> to vector<1x128xf32>
    %75 = vector.broadcast %74 : vector<1x128xf32> to vector<8x128xf32>
    %76 = arith.mulf %73, %75 : vector<8x128xf32>
    %77 = vector.broadcast %6 : vector<1x128xf32> to vector<8x128xf32>
    %78 = arith.subf %0, %77 : vector<8x128xf32>
    %79 = vector.extract_strided_slice %1 {offsets = [12, 0], sizes = [1, 128], strides = [1, 1]} : vector<24x128xf32> to vector<1x128xf32>
    %80 = vector.broadcast %79 : vector<1x128xf32> to vector<8x128xf32>
    %81 = arith.mulf %78, %80 : vector<8x128xf32>
    %82 = vector.broadcast %7 : vector<1x128xf32> to vector<8x128xf32>
    %83 = arith.subf %0, %82 : vector<8x128xf32>
    %84 = vector.extract_strided_slice %1 {offsets = [13, 0], sizes = [1, 128], strides = [1, 1]} : vector<24x128xf32> to vector<1x128xf32>
    %85 = vector.broadcast %84 : vector<1x128xf32> to vector<8x128xf32>
    %86 = arith.mulf %83, %85 : vector<8x128xf32>
    %87 = vector.broadcast %8 : vector<1x128xf32> to vector<8x128xf32>
    %88 = arith.subf %0, %87 : vector<8x128xf32>
    %89 = vector.extract_strided_slice %1 {offsets = [14, 0], sizes = [1, 128], strides = [1, 1]} : vector<24x128xf32> to vector<1x128xf32>
    %90 = vector.broadcast %89 : vector<1x128xf32> to vector<8x128xf32>
    %91 = arith.mulf %88, %90 : vector<8x128xf32>
    %92 = vector.broadcast %9 : vector<1x128xf32> to vector<8x128xf32>
    %93 = arith.subf %0, %92 : vector<8x128xf32>
    %94 = vector.extract_strided_slice %1 {offsets = [15, 0], sizes = [1, 128], strides = [1, 1]} : vector<24x128xf32> to vector<1x128xf32>
    %95 = vector.broadcast %94 : vector<1x128xf32> to vector<8x128xf32>
    %96 = arith.mulf %93, %95 : vector<8x128xf32>
    %97 = vector.broadcast %10 : vector<1x128xf32> to vector<8x128xf32>
    %98 = arith.subf %0, %97 : vector<8x128xf32>
    %99 = vector.extract_strided_slice %1 {offsets = [16, 0], sizes = [1, 128], strides = [1, 1]} : vector<24x128xf32> to vector<1x128xf32>
    %100 = vector.broadcast %99 : vector<1x128xf32> to vector<8x128xf32>
    %101 = arith.mulf %98, %100 : vector<8x128xf32>
    %102 = arith.mulf %66, %54 : vector<8x128xf32>
    %cst_7 = arith.constant 1.000000e+00 : f32
    %103 = vector.broadcast %cst_7 : f32 to vector<8x128xf32>
    %104 = arith.subf %103, %71 : vector<8x128xf32>
    %105 = arith.mulf %104, %55 : vector<8x128xf32>
    %106 = arith.addf %102, %105 : vector<8x128xf32>
    %107 = arith.mulf %71, %55 : vector<8x128xf32>
    %cst_8 = arith.constant 1.000000e+00 : f32
    %108 = vector.broadcast %cst_8 : f32 to vector<8x128xf32>
    %109 = arith.subf %108, %76 : vector<8x128xf32>
    %110 = arith.mulf %109, %56 : vector<8x128xf32>
    %111 = arith.addf %107, %110 : vector<8x128xf32>
    %112 = arith.mulf %76, %56 : vector<8x128xf32>
    %cst_9 = arith.constant 1.000000e+00 : f32
    %113 = vector.broadcast %cst_9 : f32 to vector<8x128xf32>
    %114 = arith.subf %113, %81 : vector<8x128xf32>
    %115 = arith.mulf %114, %57 : vector<8x128xf32>
    %116 = arith.addf %112, %115 : vector<8x128xf32>
    %117 = arith.mulf %81, %57 : vector<8x128xf32>
    %cst_10 = arith.constant 1.000000e+00 : f32
    %118 = vector.broadcast %cst_10 : f32 to vector<8x128xf32>
    %119 = arith.subf %118, %86 : vector<8x128xf32>
    %120 = arith.mulf %119, %58 : vector<8x128xf32>
    %121 = arith.addf %117, %120 : vector<8x128xf32>
    %122 = arith.mulf %86, %58 : vector<8x128xf32>
    %cst_11 = arith.constant 1.000000e+00 : f32
    %123 = vector.broadcast %cst_11 : f32 to vector<8x128xf32>
    %124 = arith.subf %123, %91 : vector<8x128xf32>
    %125 = arith.mulf %124, %59 : vector<8x128xf32>
    %126 = arith.addf %122, %125 : vector<8x128xf32>
    %127 = arith.mulf %91, %59 : vector<8x128xf32>
    %cst_12 = arith.constant 1.000000e+00 : f32
    %128 = vector.broadcast %cst_12 : f32 to vector<8x128xf32>
    %129 = arith.subf %128, %96 : vector<8x128xf32>
    %130 = arith.mulf %129, %60 : vector<8x128xf32>
    %131 = arith.addf %127, %130 : vector<8x128xf32>
    %132 = arith.mulf %96, %60 : vector<8x128xf32>
    %cst_13 = arith.constant 1.000000e+00 : f32
    %133 = vector.broadcast %cst_13 : f32 to vector<8x128xf32>
    %134 = arith.subf %133, %101 : vector<8x128xf32>
    %135 = arith.mulf %134, %61 : vector<8x128xf32>
    %136 = arith.addf %132, %135 : vector<8x128xf32>
    %137 = vector.broadcast %3 : vector<1x128xf32> to vector<8x128xf32>
    %138 = arith.subf %0, %137 : vector<8x128xf32>
    %139 = vector.extract_strided_slice %1 {offsets = [17, 0], sizes = [1, 128], strides = [1, 1]} : vector<24x128xf32> to vector<1x128xf32>
    %140 = vector.broadcast %139 : vector<1x128xf32> to vector<8x128xf32>
    %141 = arith.mulf %138, %140 : vector<8x128xf32>
    %142 = vector.broadcast %4 : vector<1x128xf32> to vector<8x128xf32>
    %143 = arith.subf %0, %142 : vector<8x128xf32>
    %144 = vector.extract_strided_slice %1 {offsets = [18, 0], sizes = [1, 128], strides = [1, 1]} : vector<24x128xf32> to vector<1x128xf32>
    %145 = vector.broadcast %144 : vector<1x128xf32> to vector<8x128xf32>
    %146 = arith.mulf %143, %145 : vector<8x128xf32>
    %147 = vector.broadcast %5 : vector<1x128xf32> to vector<8x128xf32>
    %148 = arith.subf %0, %147 : vector<8x128xf32>
    %149 = vector.extract_strided_slice %1 {offsets = [19, 0], sizes = [1, 128], strides = [1, 1]} : vector<24x128xf32> to vector<1x128xf32>
    %150 = vector.broadcast %149 : vector<1x128xf32> to vector<8x128xf32>
    %151 = arith.mulf %148, %150 : vector<8x128xf32>
    %152 = vector.broadcast %6 : vector<1x128xf32> to vector<8x128xf32>
    %153 = arith.subf %0, %152 : vector<8x128xf32>
    %154 = vector.extract_strided_slice %1 {offsets = [20, 0], sizes = [1, 128], strides = [1, 1]} : vector<24x128xf32> to vector<1x128xf32>
    %155 = vector.broadcast %154 : vector<1x128xf32> to vector<8x128xf32>
    %156 = arith.mulf %153, %155 : vector<8x128xf32>
    %157 = vector.broadcast %7 : vector<1x128xf32> to vector<8x128xf32>
    %158 = arith.subf %0, %157 : vector<8x128xf32>
    %159 = vector.extract_strided_slice %1 {offsets = [21, 0], sizes = [1, 128], strides = [1, 1]} : vector<24x128xf32> to vector<1x128xf32>
    %160 = vector.broadcast %159 : vector<1x128xf32> to vector<8x128xf32>
    %161 = arith.mulf %158, %160 : vector<8x128xf32>
    %162 = vector.broadcast %8 : vector<1x128xf32> to vector<8x128xf32>
    %163 = arith.subf %0, %162 : vector<8x128xf32>
    %164 = vector.extract_strided_slice %1 {offsets = [22, 0], sizes = [1, 128], strides = [1, 1]} : vector<24x128xf32> to vector<1x128xf32>
    %165 = vector.broadcast %164 : vector<1x128xf32> to vector<8x128xf32>
    %166 = arith.mulf %163, %165 : vector<8x128xf32>
    %167 = vector.broadcast %9 : vector<1x128xf32> to vector<8x128xf32>
    %168 = arith.subf %0, %167 : vector<8x128xf32>
    %169 = vector.extract_strided_slice %1 {offsets = [23, 0], sizes = [1, 128], strides = [1, 1]} : vector<24x128xf32> to vector<1x128xf32>
    %170 = vector.broadcast %169 : vector<1x128xf32> to vector<8x128xf32>
    %171 = arith.mulf %168, %170 : vector<8x128xf32>
    %172 = arith.mulf %141, %106 : vector<8x128xf32>
    %cst_14 = arith.constant 1.000000e+00 : f32
    %173 = vector.broadcast %cst_14 : f32 to vector<8x128xf32>
    %174 = arith.subf %173, %146 : vector<8x128xf32>
    %175 = arith.mulf %174, %111 : vector<8x128xf32>
    %176 = arith.addf %172, %175 : vector<8x128xf32>
    %177 = arith.mulf %146, %111 : vector<8x128xf32>
    %cst_15 = arith.constant 1.000000e+00 : f32
    %178 = vector.broadcast %cst_15 : f32 to vector<8x128xf32>
    %179 = arith.subf %178, %151 : vector<8x128xf32>
    %180 = arith.mulf %179, %116 : vector<8x128xf32>
    %181 = arith.addf %177, %180 : vector<8x128xf32>
    %182 = arith.mulf %151, %116 : vector<8x128xf32>
    %cst_16 = arith.constant 1.000000e+00 : f32
    %183 = vector.broadcast %cst_16 : f32 to vector<8x128xf32>
    %184 = arith.subf %183, %156 : vector<8x128xf32>
    %185 = arith.mulf %184, %121 : vector<8x128xf32>
    %186 = arith.addf %182, %185 : vector<8x128xf32>
    %187 = arith.mulf %156, %121 : vector<8x128xf32>
    %cst_17 = arith.constant 1.000000e+00 : f32
    %188 = vector.broadcast %cst_17 : f32 to vector<8x128xf32>
    %189 = arith.subf %188, %161 : vector<8x128xf32>
    %190 = arith.mulf %189, %126 : vector<8x128xf32>
    %191 = arith.addf %187, %190 : vector<8x128xf32>
    %192 = arith.mulf %161, %126 : vector<8x128xf32>
    %cst_18 = arith.constant 1.000000e+00 : f32
    %193 = vector.broadcast %cst_18 : f32 to vector<8x128xf32>
    %194 = arith.subf %193, %166 : vector<8x128xf32>
    %195 = arith.mulf %194, %131 : vector<8x128xf32>
    %196 = arith.addf %192, %195 : vector<8x128xf32>
    %197 = arith.mulf %166, %131 : vector<8x128xf32>
    %cst_19 = arith.constant 1.000000e+00 : f32
    %198 = vector.broadcast %cst_19 : f32 to vector<8x128xf32>
    %199 = arith.subf %198, %171 : vector<8x128xf32>
    %200 = arith.mulf %199, %136 : vector<8x128xf32>
    %201 = arith.addf %197, %200 : vector<8x128xf32>
    %c128 = arith.constant 128 : index
    %c0_20 = arith.constant 0 : index
    %202 = vector.load %arg3[%c128, %c0_20] : memref<896x128xf32, #tpu.memory_space<vmem>>, vector<128x128xf32>
    %cst_21 = arith.constant dense<0.000000e+00> : vector<8x128xf32>
    %203 = tpu.matmul %176, %202, %cst_21 {dimension_numbers = #tpu.dot_dimension_numbers<[1], [0], [0], [1], [0, 0, 1, 1], [], []>} : vector<8x128xf32>, vector<128x128xf32>, vector<8x128xf32> -> vector<8x128xf32>
    %204 = arith.addf %17, %203 : vector<8x128xf32>
    %c256 = arith.constant 256 : index
    %c0_22 = arith.constant 0 : index
    %205 = vector.load %arg3[%c256, %c0_22] : memref<896x128xf32, #tpu.memory_space<vmem>>, vector<128x128xf32>
    %cst_23 = arith.constant dense<0.000000e+00> : vector<8x128xf32>
    %206 = tpu.matmul %181, %205, %cst_23 {dimension_numbers = #tpu.dot_dimension_numbers<[1], [0], [0], [1], [0, 0, 1, 1], [], []>} : vector<8x128xf32>, vector<128x128xf32>, vector<8x128xf32> -> vector<8x128xf32>
    %207 = arith.addf %204, %206 : vector<8x128xf32>
    %c384 = arith.constant 384 : index
    %c0_24 = arith.constant 0 : index
    %208 = vector.load %arg3[%c384, %c0_24] : memref<896x128xf32, #tpu.memory_space<vmem>>, vector<128x128xf32>
    %cst_25 = arith.constant dense<0.000000e+00> : vector<8x128xf32>
    %209 = tpu.matmul %186, %208, %cst_25 {dimension_numbers = #tpu.dot_dimension_numbers<[1], [0], [0], [1], [0, 0, 1, 1], [], []>} : vector<8x128xf32>, vector<128x128xf32>, vector<8x128xf32> -> vector<8x128xf32>
    %210 = arith.addf %207, %209 : vector<8x128xf32>
    %c512 = arith.constant 512 : index
    %c0_26 = arith.constant 0 : index
    %211 = vector.load %arg3[%c512, %c0_26] : memref<896x128xf32, #tpu.memory_space<vmem>>, vector<128x128xf32>
    %cst_27 = arith.constant dense<0.000000e+00> : vector<8x128xf32>
    %212 = tpu.matmul %191, %211, %cst_27 {dimension_numbers = #tpu.dot_dimension_numbers<[1], [0], [0], [1], [0, 0, 1, 1], [], []>} : vector<8x128xf32>, vector<128x128xf32>, vector<8x128xf32> -> vector<8x128xf32>
    %213 = arith.addf %210, %212 : vector<8x128xf32>
    %c640 = arith.constant 640 : index
    %c0_28 = arith.constant 0 : index
    %214 = vector.load %arg3[%c640, %c0_28] : memref<896x128xf32, #tpu.memory_space<vmem>>, vector<128x128xf32>
    %cst_29 = arith.constant dense<0.000000e+00> : vector<8x128xf32>
    %215 = tpu.matmul %196, %214, %cst_29 {dimension_numbers = #tpu.dot_dimension_numbers<[1], [0], [0], [1], [0, 0, 1, 1], [], []>} : vector<8x128xf32>, vector<128x128xf32>, vector<8x128xf32> -> vector<8x128xf32>
    %216 = arith.addf %213, %215 : vector<8x128xf32>
    %c768 = arith.constant 768 : index
    %c0_30 = arith.constant 0 : index
    %217 = vector.load %arg3[%c768, %c0_30] : memref<896x128xf32, #tpu.memory_space<vmem>>, vector<128x128xf32>
    %cst_31 = arith.constant dense<0.000000e+00> : vector<8x128xf32>
    %218 = tpu.matmul %201, %217, %cst_31 {dimension_numbers = #tpu.dot_dimension_numbers<[1], [0], [0], [1], [0, 0, 1, 1], [], []>} : vector<8x128xf32>, vector<128x128xf32>, vector<8x128xf32> -> vector<8x128xf32>
    %219 = arith.addf %216, %218 : vector<8x128xf32>
    %c0_32 = arith.constant 0 : index
    %c0_33 = arith.constant 0 : index
    %220 = vector.load %arg4[%c0_32, %c0_33] : memref<24x128xf32, #tpu.memory_space<vmem>>, vector<24x128xf32>
    %cst_34 = arith.constant 0.000000e+00 : f32
    %221 = vector.broadcast %cst_34 : f32 to vector<8x128xf32>
    %222 = vector.extract_strided_slice %220 {offsets = [0, 0], sizes = [1, 128], strides = [1, 1]} : vector<24x128xf32> to vector<1x128xf32>
    %223 = vector.extract_strided_slice %220 {offsets = [1, 0], sizes = [1, 128], strides = [1, 1]} : vector<24x128xf32> to vector<1x128xf32>
    %224 = vector.extract_strided_slice %220 {offsets = [2, 0], sizes = [1, 128], strides = [1, 1]} : vector<24x128xf32> to vector<1x128xf32>
    %225 = vector.extract_strided_slice %220 {offsets = [3, 0], sizes = [1, 128], strides = [1, 1]} : vector<24x128xf32> to vector<1x128xf32>
    %226 = vector.extract_strided_slice %220 {offsets = [4, 0], sizes = [1, 128], strides = [1, 1]} : vector<24x128xf32> to vector<1x128xf32>
    %227 = vector.extract_strided_slice %220 {offsets = [5, 0], sizes = [1, 128], strides = [1, 1]} : vector<24x128xf32> to vector<1x128xf32>
    %228 = vector.extract_strided_slice %220 {offsets = [6, 0], sizes = [1, 128], strides = [1, 1]} : vector<24x128xf32> to vector<1x128xf32>
    %229 = vector.extract_strided_slice %220 {offsets = [7, 0], sizes = [1, 128], strides = [1, 1]} : vector<24x128xf32> to vector<1x128xf32>
    %230 = vector.extract_strided_slice %220 {offsets = [8, 0], sizes = [1, 128], strides = [1, 1]} : vector<24x128xf32> to vector<1x128xf32>
    %cst_35 = arith.constant 0.00999999977 : f32
    %231 = vector.broadcast %cst_35 : f32 to vector<8x128xf32>
    %232 = arith.mulf %231, %219 : vector<8x128xf32>
    %233 = arith.maximumf %219, %232 : vector<8x128xf32>
    %c0_36 = arith.constant 0 : index
    %c0_37 = arith.constant 0 : index
    %234 = vector.load %arg5[%c0_36, %c0_37] : memref<896x128xf32, #tpu.memory_space<vmem>>, vector<128x128xf32>
    %cst_38 = arith.constant dense<0.000000e+00> : vector<8x128xf32>
    %235 = tpu.matmul %233, %234, %cst_38 {dimension_numbers = #tpu.dot_dimension_numbers<[1], [0], [0], [1], [0, 0, 1, 1], [], []>} : vector<8x128xf32>, vector<128x128xf32>, vector<8x128xf32> -> vector<8x128xf32>
    %236 = arith.addf %221, %235 : vector<8x128xf32>
    %237 = vector.broadcast %222 : vector<1x128xf32> to vector<8x128xf32>
    %238 = arith.cmpf oge, %219, %237 : vector<8x128xf32>
    %239 = arith.extui %238 : vector<8x128xi1> to vector<8x128xi32>
    %240 = arith.sitofp %239 : vector<8x128xi32> to vector<8x128xf32>
    %241 = vector.broadcast %223 : vector<1x128xf32> to vector<8x128xf32>
    %242 = arith.cmpf oge, %219, %241 : vector<8x128xf32>
    %243 = arith.extui %242 : vector<8x128xi1> to vector<8x128xi32>
    %244 = arith.sitofp %243 : vector<8x128xi32> to vector<8x128xf32>
    %245 = vector.broadcast %224 : vector<1x128xf32> to vector<8x128xf32>
    %246 = arith.cmpf oge, %219, %245 : vector<8x128xf32>
    %247 = arith.extui %246 : vector<8x128xi1> to vector<8x128xi32>
    %248 = arith.sitofp %247 : vector<8x128xi32> to vector<8x128xf32>
    %249 = vector.broadcast %225 : vector<1x128xf32> to vector<8x128xf32>
    %250 = arith.cmpf oge, %219, %249 : vector<8x128xf32>
    %251 = arith.extui %250 : vector<8x128xi1> to vector<8x128xi32>
    %252 = arith.sitofp %251 : vector<8x128xi32> to vector<8x128xf32>
    %253 = vector.broadcast %226 : vector<1x128xf32> to vector<8x128xf32>
    %254 = arith.cmpf oge, %219, %253 : vector<8x128xf32>
    %255 = arith.extui %254 : vector<8x128xi1> to vector<8x128xi32>
    %256 = arith.sitofp %255 : vector<8x128xi32> to vector<8x128xf32>
    %257 = vector.broadcast %227 : vector<1x128xf32> to vector<8x128xf32>
    %258 = arith.cmpf oge, %219, %257 : vector<8x128xf32>
    %259 = arith.extui %258 : vector<8x128xi1> to vector<8x128xi32>
    %260 = arith.sitofp %259 : vector<8x128xi32> to vector<8x128xf32>
    %261 = vector.broadcast %228 : vector<1x128xf32> to vector<8x128xf32>
    %262 = arith.cmpf oge, %219, %261 : vector<8x128xf32>
    %263 = arith.extui %262 : vector<8x128xi1> to vector<8x128xi32>
    %264 = arith.sitofp %263 : vector<8x128xi32> to vector<8x128xf32>
    %265 = vector.broadcast %229 : vector<1x128xf32> to vector<8x128xf32>
    %266 = arith.cmpf oge, %219, %265 : vector<8x128xf32>
    %267 = arith.extui %266 : vector<8x128xi1> to vector<8x128xi32>
    %268 = arith.sitofp %267 : vector<8x128xi32> to vector<8x128xf32>
    %269 = vector.broadcast %230 : vector<1x128xf32> to vector<8x128xf32>
    %270 = arith.cmpf oge, %219, %269 : vector<8x128xf32>
    %271 = arith.extui %270 : vector<8x128xi1> to vector<8x128xi32>
    %272 = arith.sitofp %271 : vector<8x128xi32> to vector<8x128xf32>
    %273 = arith.subf %240, %244 : vector<8x128xf32>
    %274 = arith.subf %244, %248 : vector<8x128xf32>
    %275 = arith.subf %248, %252 : vector<8x128xf32>
    %276 = arith.subf %252, %256 : vector<8x128xf32>
    %277 = arith.subf %256, %260 : vector<8x128xf32>
    %278 = arith.subf %260, %264 : vector<8x128xf32>
    %279 = arith.subf %264, %268 : vector<8x128xf32>
    %280 = arith.subf %268, %272 : vector<8x128xf32>
    %281 = vector.broadcast %222 : vector<1x128xf32> to vector<8x128xf32>
    %282 = arith.subf %219, %281 : vector<8x128xf32>
    %283 = vector.extract_strided_slice %220 {offsets = [9, 0], sizes = [1, 128], strides = [1, 1]} : vector<24x128xf32> to vector<1x128xf32>
    %284 = vector.broadcast %283 : vector<1x128xf32> to vector<8x128xf32>
    %285 = arith.mulf %282, %284 : vector<8x128xf32>
    %286 = vector.broadcast %223 : vector<1x128xf32> to vector<8x128xf32>
    %287 = arith.subf %219, %286 : vector<8x128xf32>
    %288 = vector.extract_strided_slice %220 {offsets = [10, 0], sizes = [1, 128], strides = [1, 1]} : vector<24x128xf32> to vector<1x128xf32>
    %289 = vector.broadcast %288 : vector<1x128xf32> to vector<8x128xf32>
    %290 = arith.mulf %287, %289 : vector<8x128xf32>
    %291 = vector.broadcast %224 : vector<1x128xf32> to vector<8x128xf32>
    %292 = arith.subf %219, %291 : vector<8x128xf32>
    %293 = vector.extract_strided_slice %220 {offsets = [11, 0], sizes = [1, 128], strides = [1, 1]} : vector<24x128xf32> to vector<1x128xf32>
    %294 = vector.broadcast %293 : vector<1x128xf32> to vector<8x128xf32>
    %295 = arith.mulf %292, %294 : vector<8x128xf32>
    %296 = vector.broadcast %225 : vector<1x128xf32> to vector<8x128xf32>
    %297 = arith.subf %219, %296 : vector<8x128xf32>
    %298 = vector.extract_strided_slice %220 {offsets = [12, 0], sizes = [1, 128], strides = [1, 1]} : vector<24x128xf32> to vector<1x128xf32>
    %299 = vector.broadcast %298 : vector<1x128xf32> to vector<8x128xf32>
    %300 = arith.mulf %297, %299 : vector<8x128xf32>
    %301 = vector.broadcast %226 : vector<1x128xf32> to vector<8x128xf32>
    %302 = arith.subf %219, %301 : vector<8x128xf32>
    %303 = vector.extract_strided_slice %220 {offsets = [13, 0], sizes = [1, 128], strides = [1, 1]} : vector<24x128xf32> to vector<1x128xf32>
    %304 = vector.broadcast %303 : vector<1x128xf32> to vector<8x128xf32>
    %305 = arith.mulf %302, %304 : vector<8x128xf32>
    %306 = vector.broadcast %227 : vector<1x128xf32> to vector<8x128xf32>
    %307 = arith.subf %219, %306 : vector<8x128xf32>
    %308 = vector.extract_strided_slice %220 {offsets = [14, 0], sizes = [1, 128], strides = [1, 1]} : vector<24x128xf32> to vector<1x128xf32>
    %309 = vector.broadcast %308 : vector<1x128xf32> to vector<8x128xf32>
    %310 = arith.mulf %307, %309 : vector<8x128xf32>
    %311 = vector.broadcast %228 : vector<1x128xf32> to vector<8x128xf32>
    %312 = arith.subf %219, %311 : vector<8x128xf32>
    %313 = vector.extract_strided_slice %220 {offsets = [15, 0], sizes = [1, 128], strides = [1, 1]} : vector<24x128xf32> to vector<1x128xf32>
    %314 = vector.broadcast %313 : vector<1x128xf32> to vector<8x128xf32>
    %315 = arith.mulf %312, %314 : vector<8x128xf32>
    %316 = vector.broadcast %229 : vector<1x128xf32> to vector<8x128xf32>
    %317 = arith.subf %219, %316 : vector<8x128xf32>
    %318 = vector.extract_strided_slice %220 {offsets = [16, 0], sizes = [1, 128], strides = [1, 1]} : vector<24x128xf32> to vector<1x128xf32>
    %319 = vector.broadcast %318 : vector<1x128xf32> to vector<8x128xf32>
    %320 = arith.mulf %317, %319 : vector<8x128xf32>
    %321 = arith.mulf %285, %273 : vector<8x128xf32>
    %cst_39 = arith.constant 1.000000e+00 : f32
    %322 = vector.broadcast %cst_39 : f32 to vector<8x128xf32>
    %323 = arith.subf %322, %290 : vector<8x128xf32>
    %324 = arith.mulf %323, %274 : vector<8x128xf32>
    %325 = arith.addf %321, %324 : vector<8x128xf32>
    %326 = arith.mulf %290, %274 : vector<8x128xf32>
    %cst_40 = arith.constant 1.000000e+00 : f32
    %327 = vector.broadcast %cst_40 : f32 to vector<8x128xf32>
    %328 = arith.subf %327, %295 : vector<8x128xf32>
    %329 = arith.mulf %328, %275 : vector<8x128xf32>
    %330 = arith.addf %326, %329 : vector<8x128xf32>
    %331 = arith.mulf %295, %275 : vector<8x128xf32>
    %cst_41 = arith.constant 1.000000e+00 : f32
    %332 = vector.broadcast %cst_41 : f32 to vector<8x128xf32>
    %333 = arith.subf %332, %300 : vector<8x128xf32>
    %334 = arith.mulf %333, %276 : vector<8x128xf32>
    %335 = arith.addf %331, %334 : vector<8x128xf32>
    %336 = arith.mulf %300, %276 : vector<8x128xf32>
    %cst_42 = arith.constant 1.000000e+00 : f32
    %337 = vector.broadcast %cst_42 : f32 to vector<8x128xf32>
    %338 = arith.subf %337, %305 : vector<8x128xf32>
    %339 = arith.mulf %338, %277 : vector<8x128xf32>
    %340 = arith.addf %336, %339 : vector<8x128xf32>
    %341 = arith.mulf %305, %277 : vector<8x128xf32>
    %cst_43 = arith.constant 1.000000e+00 : f32
    %342 = vector.broadcast %cst_43 : f32 to vector<8x128xf32>
    %343 = arith.subf %342, %310 : vector<8x128xf32>
    %344 = arith.mulf %343, %278 : vector<8x128xf32>
    %345 = arith.addf %341, %344 : vector<8x128xf32>
    %346 = arith.mulf %310, %278 : vector<8x128xf32>
    %cst_44 = arith.constant 1.000000e+00 : f32
    %347 = vector.broadcast %cst_44 : f32 to vector<8x128xf32>
    %348 = arith.subf %347, %315 : vector<8x128xf32>
    %349 = arith.mulf %348, %279 : vector<8x128xf32>
    %350 = arith.addf %346, %349 : vector<8x128xf32>
    %351 = arith.mulf %315, %279 : vector<8x128xf32>
    %cst_45 = arith.constant 1.000000e+00 : f32
    %352 = vector.broadcast %cst_45 : f32 to vector<8x128xf32>
    %353 = arith.subf %352, %320 : vector<8x128xf32>
    %354 = arith.mulf %353, %280 : vector<8x128xf32>
    %355 = arith.addf %351, %354 : vector<8x128xf32>
    %356 = vector.broadcast %222 : vector<1x128xf32> to vector<8x128xf32>
    %357 = arith.subf %219, %356 : vector<8x128xf32>
    %358 = vector.extract_strided_slice %220 {offsets = [17, 0], sizes = [1, 128], strides = [1, 1]} : vector<24x128xf32> to vector<1x128xf32>
    %359 = vector.broadcast %358 : vector<1x128xf32> to vector<8x128xf32>
    %360 = arith.mulf %357, %359 : vector<8x128xf32>
    %361 = vector.broadcast %223 : vector<1x128xf32> to vector<8x128xf32>
    %362 = arith.subf %219, %361 : vector<8x128xf32>
    %363 = vector.extract_strided_slice %220 {offsets = [18, 0], sizes = [1, 128], strides = [1, 1]} : vector<24x128xf32> to vector<1x128xf32>
    %364 = vector.broadcast %363 : vector<1x128xf32> to vector<8x128xf32>
    %365 = arith.mulf %362, %364 : vector<8x128xf32>
    %366 = vector.broadcast %224 : vector<1x128xf32> to vector<8x128xf32>
    %367 = arith.subf %219, %366 : vector<8x128xf32>
    %368 = vector.extract_strided_slice %220 {offsets = [19, 0], sizes = [1, 128], strides = [1, 1]} : vector<24x128xf32> to vector<1x128xf32>
    %369 = vector.broadcast %368 : vector<1x128xf32> to vector<8x128xf32>
    %370 = arith.mulf %367, %369 : vector<8x128xf32>
    %371 = vector.broadcast %225 : vector<1x128xf32> to vector<8x128xf32>
    %372 = arith.subf %219, %371 : vector<8x128xf32>
    %373 = vector.extract_strided_slice %220 {offsets = [20, 0], sizes = [1, 128], strides = [1, 1]} : vector<24x128xf32> to vector<1x128xf32>
    %374 = vector.broadcast %373 : vector<1x128xf32> to vector<8x128xf32>
    %375 = arith.mulf %372, %374 : vector<8x128xf32>
    %376 = vector.broadcast %226 : vector<1x128xf32> to vector<8x128xf32>
    %377 = arith.subf %219, %376 : vector<8x128xf32>
    %378 = vector.extract_strided_slice %220 {offsets = [21, 0], sizes = [1, 128], strides = [1, 1]} : vector<24x128xf32> to vector<1x128xf32>
    %379 = vector.broadcast %378 : vector<1x128xf32> to vector<8x128xf32>
    %380 = arith.mulf %377, %379 : vector<8x128xf32>
    %381 = vector.broadcast %227 : vector<1x128xf32> to vector<8x128xf32>
    %382 = arith.subf %219, %381 : vector<8x128xf32>
    %383 = vector.extract_strided_slice %220 {offsets = [22, 0], sizes = [1, 128], strides = [1, 1]} : vector<24x128xf32> to vector<1x128xf32>
    %384 = vector.broadcast %383 : vector<1x128xf32> to vector<8x128xf32>
    %385 = arith.mulf %382, %384 : vector<8x128xf32>
    %386 = vector.broadcast %228 : vector<1x128xf32> to vector<8x128xf32>
    %387 = arith.subf %219, %386 : vector<8x128xf32>
    %388 = vector.extract_strided_slice %220 {offsets = [23, 0], sizes = [1, 128], strides = [1, 1]} : vector<24x128xf32> to vector<1x128xf32>
    %389 = vector.broadcast %388 : vector<1x128xf32> to vector<8x128xf32>
    %390 = arith.mulf %387, %389 : vector<8x128xf32>
    %391 = arith.mulf %360, %325 : vector<8x128xf32>
    %cst_46 = arith.constant 1.000000e+00 : f32
    %392 = vector.broadcast %cst_46 : f32 to vector<8x128xf32>
    %393 = arith.subf %392, %365 : vector<8x128xf32>
    %394 = arith.mulf %393, %330 : vector<8x128xf32>
    %395 = arith.addf %391, %394 : vector<8x128xf32>
    %396 = arith.mulf %365, %330 : vector<8x128xf32>
    %cst_47 = arith.constant 1.000000e+00 : f32
    %397 = vector.broadcast %cst_47 : f32 to vector<8x128xf32>
    %398 = arith.subf %397, %370 : vector<8x128xf32>
    %399 = arith.mulf %398, %335 : vector<8x128xf32>
    %400 = arith.addf %396, %399 : vector<8x128xf32>
    %401 = arith.mulf %370, %335 : vector<8x128xf32>
    %cst_48 = arith.constant 1.000000e+00 : f32
    %402 = vector.broadcast %cst_48 : f32 to vector<8x128xf32>
    %403 = arith.subf %402, %375 : vector<8x128xf32>
    %404 = arith.mulf %403, %340 : vector<8x128xf32>
    %405 = arith.addf %401, %404 : vector<8x128xf32>
    %406 = arith.mulf %375, %340 : vector<8x128xf32>
    %cst_49 = arith.constant 1.000000e+00 : f32
    %407 = vector.broadcast %cst_49 : f32 to vector<8x128xf32>
    %408 = arith.subf %407, %380 : vector<8x128xf32>
    %409 = arith.mulf %408, %345 : vector<8x128xf32>
    %410 = arith.addf %406, %409 : vector<8x128xf32>
    %411 = arith.mulf %380, %345 : vector<8x128xf32>
    %cst_50 = arith.constant 1.000000e+00 : f32
    %412 = vector.broadcast %cst_50 : f32 to vector<8x128xf32>
    %413 = arith.subf %412, %385 : vector<8x128xf32>
    %414 = arith.mulf %413, %350 : vector<8x128xf32>
    %415 = arith.addf %411, %414 : vector<8x128xf32>
    %416 = arith.mulf %385, %350 : vector<8x128xf32>
    %cst_51 = arith.constant 1.000000e+00 : f32
    %417 = vector.broadcast %cst_51 : f32 to vector<8x128xf32>
    %418 = arith.subf %417, %390 : vector<8x128xf32>
    %419 = arith.mulf %418, %355 : vector<8x128xf32>
    %420 = arith.addf %416, %419 : vector<8x128xf32>
    %c128_52 = arith.constant 128 : index
    %c0_53 = arith.constant 0 : index
    %421 = vector.load %arg5[%c128_52, %c0_53] : memref<896x128xf32, #tpu.memory_space<vmem>>, vector<128x128xf32>
    %cst_54 = arith.constant dense<0.000000e+00> : vector<8x128xf32>
    %422 = tpu.matmul %395, %421, %cst_54 {dimension_numbers = #tpu.dot_dimension_numbers<[1], [0], [0], [1], [0, 0, 1, 1], [], []>} : vector<8x128xf32>, vector<128x128xf32>, vector<8x128xf32> -> vector<8x128xf32>
    %423 = arith.addf %236, %422 : vector<8x128xf32>
    %c256_55 = arith.constant 256 : index
    %c0_56 = arith.constant 0 : index
    %424 = vector.load %arg5[%c256_55, %c0_56] : memref<896x128xf32, #tpu.memory_space<vmem>>, vector<128x128xf32>
    %cst_57 = arith.constant dense<0.000000e+00> : vector<8x128xf32>
    %425 = tpu.matmul %400, %424, %cst_57 {dimension_numbers = #tpu.dot_dimension_numbers<[1], [0], [0], [1], [0, 0, 1, 1], [], []>} : vector<8x128xf32>, vector<128x128xf32>, vector<8x128xf32> -> vector<8x128xf32>
    %426 = arith.addf %423, %425 : vector<8x128xf32>
    %c384_58 = arith.constant 384 : index
    %c0_59 = arith.constant 0 : index
    %427 = vector.load %arg5[%c384_58, %c0_59] : memref<896x128xf32, #tpu.memory_space<vmem>>, vector<128x128xf32>
    %cst_60 = arith.constant dense<0.000000e+00> : vector<8x128xf32>
    %428 = tpu.matmul %405, %427, %cst_60 {dimension_numbers = #tpu.dot_dimension_numbers<[1], [0], [0], [1], [0, 0, 1, 1], [], []>} : vector<8x128xf32>, vector<128x128xf32>, vector<8x128xf32> -> vector<8x128xf32>
    %429 = arith.addf %426, %428 : vector<8x128xf32>
    %c512_61 = arith.constant 512 : index
    %c0_62 = arith.constant 0 : index
    %430 = vector.load %arg5[%c512_61, %c0_62] : memref<896x128xf32, #tpu.memory_space<vmem>>, vector<128x128xf32>
    %cst_63 = arith.constant dense<0.000000e+00> : vector<8x128xf32>
    %431 = tpu.matmul %410, %430, %cst_63 {dimension_numbers = #tpu.dot_dimension_numbers<[1], [0], [0], [1], [0, 0, 1, 1], [], []>} : vector<8x128xf32>, vector<128x128xf32>, vector<8x128xf32> -> vector<8x128xf32>
    %432 = arith.addf %429, %431 : vector<8x128xf32>
    %c640_64 = arith.constant 640 : index
    %c0_65 = arith.constant 0 : index
    %433 = vector.load %arg5[%c640_64, %c0_65] : memref<896x128xf32, #tpu.memory_space<vmem>>, vector<128x128xf32>
    %cst_66 = arith.constant dense<0.000000e+00> : vector<8x128xf32>
    %434 = tpu.matmul %415, %433, %cst_66 {dimension_numbers = #tpu.dot_dimension_numbers<[1], [0], [0], [1], [0, 0, 1, 1], [], []>} : vector<8x128xf32>, vector<128x128xf32>, vector<8x128xf32> -> vector<8x128xf32>
    %435 = arith.addf %432, %434 : vector<8x128xf32>
    %c768_67 = arith.constant 768 : index
    %c0_68 = arith.constant 0 : index
    %436 = vector.load %arg5[%c768_67, %c0_68] : memref<896x128xf32, #tpu.memory_space<vmem>>, vector<128x128xf32>
    %cst_69 = arith.constant dense<0.000000e+00> : vector<8x128xf32>
    %437 = tpu.matmul %420, %436, %cst_69 {dimension_numbers = #tpu.dot_dimension_numbers<[1], [0], [0], [1], [0, 0, 1, 1], [], []>} : vector<8x128xf32>, vector<128x128xf32>, vector<8x128xf32> -> vector<8x128xf32>
    %438 = arith.addf %435, %437 : vector<8x128xf32>
    %c0_70 = arith.constant 0 : index
    %c0_71 = arith.constant 0 : index
    %439 = vector.load %arg6[%c0_70, %c0_71] : memref<8x128xf32, #tpu.memory_space<vmem>>, vector<8x128xf32>
    tpu.vector_store %arg6[%c0_70, %c0_71], %438 {strides = array<i32>} : memref<8x128xf32, #tpu.memory_space<vmem>>, vector<8x128xf32>,
    return
  }
  func.func @transform_0(%arg0: i32) -> (i32, i32) {
    %c0_i32 = arith.constant 0 : i32
    %c0_i32_0 = arith.constant 0 : i32
    return %arg0, %c0_i32 : i32, i32
  }
  func.func @transform_1(%arg0: i32) -> (i32, i32) {
    %c0_i32 = arith.constant 0 : i32
    %c0_i32_0 = arith.constant 0 : i32
    %c0_i32_1 = arith.constant 0 : i32
    return %c0_i32, %c0_i32_0 : i32, i32
  }
  func.func @transform_2(%arg0: i32) -> (i32, i32) {
    %c0_i32 = arith.constant 0 : i32
    %c0_i32_0 = arith.constant 0 : i32
    %c0_i32_1 = arith.constant 0 : i32
    return %c0_i32, %c0_i32_0 : i32, i32
  }
  func.func @transform_3(%arg0: i32) -> (i32, i32) {
    %c0_i32 = arith.constant 0 : i32
    %c0_i32_0 = arith.constant 0 : i32
    %c0_i32_1 = arith.constant 0 : i32
    return %c0_i32, %c0_i32_0 : i32, i32
  }
  func.func @transform_4(%arg0: i32) -> (i32, i32) {
    %c0_i32 = arith.constant 0 : i32
    %c0_i32_0 = arith.constant 0 : i32
    %c0_i32_1 = arith.constant 0 : i32
    return %c0_i32, %c0_i32_0 : i32, i32
  }
  func.func @transform_5(%arg0: i32) -> (i32, i32) {
    %c0_i32 = arith.constant 0 : i32
    %c0_i32_0 = arith.constant 0 : i32
    return %arg0, %c0_i32 : i32, i32
  }
}

</mosaic_0001>

<llo_original>
// kernel: kan_forward.1
$region0: #{kan_forward.1}
  #allocation0 [shape = 'u32[]', space=smem, size = 0x4, offset = 0x4, fixed_abs, tag = 'smem constant byte address 0x4 - core index']
  #allocation1 [shape = 'u32[144,128]{1,0:T(1,128)}', space=vmem, size = 0x12000, scoped, tag = 'internal scratch']
  %s0 = inlined_call_operand.vmem [shape: f32[8,128], index: 0, kind: input, shape index: {}]
  %s1 = inlined_call_operand.hbm [shape: f32[24,128], index: 1, kind: input, shape index: {}]
  %s2 = inlined_call_operand.hbm [shape: f32[896,128], index: 2, kind: input, shape index: {}]
  %s3 = inlined_call_operand.vmem [shape: f32[24,128], index: 3, kind: input, shape index: {}]
  %s4 = inlined_call_operand.hbm [shape: f32[896,128], index: 4, kind: input, shape index: {}]
  %s5 = inlined_call_operand.hbm [shape: f32[8,128], index: 5, kind: output, shape index: {}]
  %s6 = sld [smem:[#allocation0]]
  $region42: #{kan_forward.1} parent=0
    _
  %s8 = ssub.s32 1, %s6
  %s9 = scalar_select 0, %s8, %s6
  $region1: #{kan_forward.1} parent=0
    #allocation2 [shape = 'u8[12288]{0}', space=vmem, size = 0x3000, scoped, tag = 'input window, operand 1, single buffered']
    #allocation3 [shape = 's32[1]{0}', space=sflag, size = 0x4, scoped, tag = 'scoped memory for kan_forward.1']
    #allocation4 [shape = 's32[1]{0}', space=sflag, size = 0x4, scoped, tag = 'scoped memory for kan_forward.1']
    #allocation5 [shape = 'u8[458752]{0}', space=vmem, size = 0x70000, scoped, tag = 'input window, operand 2, single buffered']
    #allocation6 [shape = 's32[1]{0}', space=sflag, size = 0x4, scoped, tag = 'scoped memory for kan_forward.1']
    #allocation7 [shape = 'u8[458752]{0}', space=vmem, size = 0x70000, scoped, tag = 'input window, operand 4, single buffered']
    #allocation8 [shape = 'u8[4096]{0}', space=vmem, size = 0x1000, scoped, tag = 'output window, operand 0, single buffered']
    %10 = vsyncpa [#allocation3], 0
    %11 = vsyncpa [#allocation6], 0
    %12 = vsyncpa [#allocation4], 0
    // Predicated region
    $region2: #{kan_forward.1} parent=1 // pred_check
      _
    $region3: #{kan_forward.1} parent=1 // pred_check_branch
      %14 = sbr.rel (0) target = $region5
    $region4: #{kan_forward.1} parent=1 // pred_region
      _
    $region5: #{kan_forward.1} parent=1 // pred_fallthru
      _
    // Predicated region
    $region6: #{kan_forward.1} parent=1 // pred_check
      _
    $region7: #{kan_forward.1} parent=1 // pred_check_branch
      %16 = sbr.rel (0) target = $region9
    $region8: #{kan_forward.1} parent=1 // pred_region
      %s18 = ssub.s32 384, 384
      %19 = vsyncadd [#allocation3], %s18
      %s20 = sshll.u32 [#allocation2], 4
      %s21 = int_to_ptr.vmem [resolvable:$true] %s20
      %26 = dma.hbm_to_vmem [thread:$0]  %s1, 384, %s21, [#allocation3], 128, 128, 8
    $region9: #{kan_forward.1} parent=1 // pred_fallthru
      _
    // Predicated region
    $region10: #{kan_forward.1} parent=1 // pred_check
      _
    $region11: #{kan_forward.1} parent=1 // pred_check_branch
      %28 = sbr.rel (0) target = $region13
    $region12: #{kan_forward.1} parent=1 // pred_region
      %s30 = ssub.s32 14336, 14336
      %31 = vsyncadd [#allocation6], %s30
      %s32 = sshll.u32 [#allocation5], 4
      %s33 = int_to_ptr.vmem [resolvable:$true] %s32
      %38 = dma.hbm_to_vmem [thread:$0]  %s2, 14336, %s33, [#allocation6], 128, 128, 8
    $region13: #{kan_forward.1} parent=1 // pred_fallthru
      _
    // Predicated region
    $region14: #{kan_forward.1} parent=1 // pred_check
      _
    $region15: #{kan_forward.1} parent=1 // pred_check_branch
      %40 = sbr.rel (0) target = $region17
    $region16: #{kan_forward.1} parent=1 // pred_region
      _
    $region17: #{kan_forward.1} parent=1 // pred_fallthru
      _
    // Predicated region
    $region18: #{kan_forward.1} parent=1 // pred_check
      _
    $region19: #{kan_forward.1} parent=1 // pred_check_branch
      %42 = sbr.rel (0) target = $region21
    $region20: #{kan_forward.1} parent=1 // pred_region
      %s44 = ssub.s32 14336, 14336
      %45 = vsyncadd [#allocation6], %s44
      %s46 = sshll.u32 [#allocation7], 4
      %s47 = int_to_ptr.vmem [resolvable:$true] %s46
      %52 = dma.hbm_to_vmem [thread:$0]  %s4, 14336, %s47, [#allocation6], 128, 128, 8
    $region21: #{kan_forward.1} parent=1 // pred_fallthru
      _
    // Predicated region
    $region22: #{kan_forward.1} parent=1 // pred_check
      _
    $region23: #{kan_forward.1} parent=1 // pred_check_branch
      %54 = sbr.rel (0) target = $region25
    $region24: #{kan_forward.1} parent=1 // pred_region
      %55 = dma.done [#allocation3], 384
    $region25: #{kan_forward.1} parent=1 // pred_fallthru
      _
    // Predicated region
    $region26: #{kan_forward.1} parent=1 // pred_check
      _
    $region27: #{kan_forward.1} parent=1 // pred_check_branch
      %57 = sbr.rel (0) target = $region29
    $region28: #{kan_forward.1} parent=1 // pred_region
      %58 = dma.done [#allocation6], 14336
    $region29: #{kan_forward.1} parent=1 // pred_fallthru
      _
    // Predicated region
    $region30: #{kan_forward.1} parent=1 // pred_check
      _
    $region31: #{kan_forward.1} parent=1 // pred_check_branch
      %60 = sbr.rel (0) target = $region33
    $region32: #{kan_forward.1} parent=1 // pred_region
      %61 = dma.done [#allocation6], 14336
    $region33: #{kan_forward.1} parent=1 // pred_fallthru
      _
    %v62 = vld [vmem:[%s0] sm:$0xff]
    %v63 = vld [vmem:[#allocation2] sm:$0xff]
    %v64 = vld [vmem:[#allocation2 + $0x8] sm:$0xff]
    %v65 = vld [vmem:[#allocation2 + $0x10] sm:$0xff]
    %v66 = vmul.f32 %v62, 0.01
    %v67 = vmax.f32 %v62, %v66
    %v68 = vld [vmem:[#allocation5] sm:$0xff]
    %v69 = vld [vmem:[#allocation5 + $0x8] sm:$0xff]
    %v70 = vld [vmem:[#allocation5 + $0x10] sm:$0xff]
    %v71 = vld [vmem:[#allocation5 + $0x18] sm:$0xff]
    %v72 = vld [vmem:[#allocation5 + $0x20] sm:$0xff]
    %v73 = vld [vmem:[#allocation5 + $0x28] sm:$0xff]
    %v74 = vld [vmem:[#allocation5 + $0x30] sm:$0xff]
    %v75 = vld [vmem:[#allocation5 + $0x38] sm:$0xff]
    %v76 = vld [vmem:[#allocation5 + $0x40] sm:$0xff]
    %v77 = vld [vmem:[#allocation5 + $0x48] sm:$0xff]
    %v78 = vld [vmem:[#allocation5 + $0x50] sm:$0xff]
    %v79 = vld [vmem:[#allocation5 + $0x58] sm:$0xff]
    %v80 = vld [vmem:[#allocation5 + $0x60] sm:$0xff]
    %v81 = vld [vmem:[#allocation5 + $0x68] sm:$0xff]
    %v82 = vld [vmem:[#allocation5 + $0x70] sm:$0xff]
    %v83 = vld [vmem:[#allocation5 + $0x78] sm:$0xff]
    %v84 = vlaneseq
    %v85 = vshrl.u32 %v84, 7
    %v86 = vsub.s32 0, %v85
    %v87 = vrot.slane %v63, %v86
    %vm88 = vcmp.ge.f32.partialorder %v62, %v87
    %v89 = vsel %vm88, 1, 0
    %v90 = vcvt.s32.f32 %v89
    %v91 = vlaneseq
    %v92 = vshrl.u32 %v91, 7
    %v93 = vsub.s32 1, %v92
    %v94 = vrot.slane %v63, %v93
    %vm95 = vcmp.ge.f32.partialorder %v62, %v94
    %v96 = vsel %vm95, 1, 0
    %v97 = vcvt.s32.f32 %v96
    %v98 = vlaneseq
    %v99 = vshrl.u32 %v98, 7
    %v100 = vsub.s32 2, %v99
    %v101 = vrot.slane %v63, %v100
    %vm102 = vcmp.ge.f32.partialorder %v62, %v101
    %v103 = vsel %vm102, 1, 0
    %v104 = vcvt.s32.f32 %v103
    %v105 = vlaneseq
    %v106 = vshrl.u32 %v105, 7
    %v107 = vsub.s32 3, %v106
    %v108 = vrot.slane %v63, %v107
    %vm109 = vcmp.ge.f32.partialorder %v62, %v108
    %v110 = vsel %vm109, 1, 0
    %v111 = vcvt.s32.f32 %v110
    %v112 = vlaneseq
    %v113 = vshrl.u32 %v112, 7
    %v114 = vsub.s32 4, %v113
    %v115 = vrot.slane %v63, %v114
    %vm116 = vcmp.ge.f32.partialorder %v62, %v115
    %v117 = vsel %vm116, 1, 0
    %v118 = vcvt.s32.f32 %v117
    %v119 = vlaneseq
    %v120 = vshrl.u32 %v119, 7
    %v121 = vsub.s32 5, %v120
    %v122 = vrot.slane %v63, %v121
    %vm123 = vcmp.ge.f32.partialorder %v62, %v122
    %v124 = vsel %vm123, 1, 0
    %v125 = vcvt.s32.f32 %v124
    %v126 = vlaneseq
    %v127 = vshrl.u32 %v126, 7
    %v128 = vsub.s32 6, %v127
    %v129 = vrot.slane %v63, %v128
    %vm130 = vcmp.ge.f32.partialorder %v62, %v129
    %v131 = vsel %vm130, 1, 0
    %v132 = vcvt.s32.f32 %v131
    %v133 = vlaneseq
    %v134 = vshrl.u32 %v133, 7
    %v135 = vsub.s32 7, %v134
    %v136 = vrot.slane %v63, %v135
    %vm137 = vcmp.ge.f32.partialorder %v62, %v136
    %v138 = vsel %vm137, 1, 0
    %v139 = vcvt.s32.f32 %v138
    %v140 = vlaneseq
    %v141 = vshrl.u32 %v140, 7
    %v142 = vsub.s32 0, %v141
    %v143 = vrot.slane %v64, %v142
    %vm144 = vcmp.ge.f32.partialorder %v62, %v143
    %v145 = vsel %vm144, 1, 0
    %v146 = vcvt.s32.f32 %v145
    %v147 = vsub.f32 %v90, %v97
    %v148 = vsub.f32 %v97, %v104
    %v149 = vsub.f32 %v104, %v111
    %v150 = vsub.f32 %v111, %v118
    %v151 = vsub.f32 %v118, %v125
    %v152 = vsub.f32 %v125, %v132
    %v153 = vsub.f32 %v132, %v139
    %v154 = vsub.f32 %v139, %v146
    %v155 = vsub.f32 %v62, %v87
    %v156 = vlaneseq
    %v157 = vshrl.u32 %v156, 7
    %v158 = vsub.s32 1, %v157
    %v159 = vrot.slane %v64, %v158
    %v160 = vmul.f32 %v155, %v159
    %v161 = vsub.f32 %v62, %v94
    %v162 = vlaneseq
    %v163 = vshrl.u32 %v162, 7
    %v164 = vsub.s32 2, %v163
    %v165 = vrot.slane %v64, %v164
    %v166 = vmul.f32 %v161, %v165
    %v167 = vsub.f32 %v62, %v101
    %v168 = vlaneseq
    %v169 = vshrl.u32 %v168, 7
    %v170 = vsub.s32 3, %v169
    %v171 = vrot.slane %v64, %v170
    %v172 = vmul.f32 %v167, %v171
    %v173 = vsub.f32 %v62, %v108
    %v174 = vlaneseq
    %v175 = vshrl.u32 %v174, 7
    %v176 = vsub.s32 4, %v175
    %v177 = vrot.slane %v64, %v176
    %v178 = vmul.f32 %v173, %v177
    %v179 = vsub.f32 %v62, %v115
    %v180 = vlaneseq
    %v181 = vshrl.u32 %v180, 7
    %v182 = vsub.s32 5, %v181
    %v183 = vrot.slane %v64, %v182
    %v184 = vmul.f32 %v179, %v183
    %v185 = vsub.f32 %v62, %v122
    %v186 = vlaneseq
    %v187 = vshrl.u32 %v186, 7
    %v188 = vsub.s32 6, %v187
    %v189 = vrot.slane %v64, %v188
    %v190 = vmul.f32 %v185, %v189
    %v191 = vsub.f32 %v62, %v129
    %v192 = vlaneseq
    %v193 = vshrl.u32 %v192, 7
    %v194 = vsub.s32 7, %v193
    %v195 = vrot.slane %v64, %v194
    %v196 = vmul.f32 %v191, %v195
    %v197 = vsub.f32 %v62, %v136
    %v198 = vlaneseq
    %v199 = vshrl.u32 %v198, 7
    %v200 = vsub.s32 0, %v199
    %v201 = vrot.slane %v65, %v200
    %v202 = vmul.f32 %v197, %v201
    %v203 = vmul.f32 %v160, %v147
    %v204 = vsub.f32 1.0, %v166
    %v205 = vmul.f32 %v204, %v148
    %v206 = vadd.f32 %v203, %v205
    %v207 = vmul.f32 %v166, %v148
    %v208 = vsub.f32 1.0, %v172
    %v209 = vmul.f32 %v208, %v149
    %v210 = vadd.f32 %v207, %v209
    %v211 = vmul.f32 %v172, %v149
    %v212 = vsub.f32 1.0, %v178
    %v213 = vmul.f32 %v212, %v150
    %v214 = vadd.f32 %v211, %v213
    %v215 = vmul.f32 %v178, %v150
    %v216 = vsub.f32 1.0, %v184
    %v217 = vmul.f32 %v216, %v151
    %v218 = vadd.f32 %v215, %v217
    %v219 = vmul.f32 %v184, %v151
    %v220 = vsub.f32 1.0, %v190
    %v221 = vmul.f32 %v220, %v152
    %v222 = vadd.f32 %v219, %v221
    %v223 = vmul.f32 %v190, %v152
    %v224 = vsub.f32 1.0, %v196
    %v225 = vmul.f32 %v224, %v153
    %v226 = vadd.f32 %v223, %v225
    %v227 = vmul.f32 %v196, %v153
    %v228 = vsub.f32 1.0, %v202
    %v229 = vmul.f32 %v228, %v154
    %v230 = vadd.f32 %v227, %v229
    %v231 = vlaneseq
    %v232 = vshrl.u32 %v231, 7
    %v233 = vsub.s32 1, %v232
    %v234 = vrot.slane %v65, %v233
    %v235 = vmul.f32 %v155, %v234
    %v236 = vlaneseq
    %v237 = vshrl.u32 %v236, 7
    %v238 = vsub.s32 2, %v237
    %v239 = vrot.slane %v65, %v238
    %v240 = vmul.f32 %v161, %v239
    %v241 = vlaneseq
    %v242 = vshrl.u32 %v241, 7
    %v243 = vsub.s32 3, %v242
    %v244 = vrot.slane %v65, %v243
    %v245 = vmul.f32 %v167, %v244
    %v246 = vlaneseq
    %v247 = vshrl.u32 %v246, 7
    %v248 = vsub.s32 4, %v247
    %v249 = vrot.slane %v65, %v248
    %v250 = vmul.f32 %v173, %v249
    %v251 = vlaneseq
    %v252 = vshrl.u32 %v251, 7
    %v253 = vsub.s32 5, %v252
    %v254 = vrot.slane %v65, %v253
    %v255 = vmul.f32 %v179, %v254
    %v256 = vlaneseq
    %v257 = vshrl.u32 %v256, 7
    %v258 = vsub.s32 6, %v257
    %v259 = vrot.slane %v65, %v258
    %v260 = vmul.f32 %v185, %v259
    %v261 = vlaneseq
    %v262 = vshrl.u32 %v261, 7
    %v263 = vsub.s32 7, %v262
    %v264 = vrot.slane %v65, %v263
    %v265 = vmul.f32 %v191, %v264
    %v266 = vmul.f32 %v235, %v206
    %v267 = vsub.f32 1.0, %v240
    %v268 = vmul.f32 %v267, %v210
    %v269 = vadd.f32 %v266, %v268
    %v270 = vmul.f32 %v240, %v210
    %v271 = vsub.f32 1.0, %v245
    %v272 = vmul.f32 %v271, %v214
    %v273 = vadd.f32 %v270, %v272
    %v274 = vmul.f32 %v245, %v214
    %v275 = vsub.f32 1.0, %v250
    %v276 = vmul.f32 %v275, %v218
    %v277 = vadd.f32 %v274, %v276
    %v278 = vmul.f32 %v250, %v218
    %v279 = vsub.f32 1.0, %v255
    %v280 = vmul.f32 %v279, %v222
    %v281 = vadd.f32 %v278, %v280
    %v282 = vmul.f32 %v255, %v222
    %v283 = vsub.f32 1.0, %v260
    %v284 = vmul.f32 %v283, %v226
    %v285 = vadd.f32 %v282, %v284
    %v286 = vmul.f32 %v260, %v226
    %v287 = vsub.f32 1.0, %v265
    %v288 = vmul.f32 %v287, %v230
    %v289 = vadd.f32 %v286, %v288
    %v290 = vld [vmem:[#allocation5 + $0x80] sm:$0xff]
    %v291 = vld [vmem:[#allocation5 + $0x88] sm:$0xff]
    %v292 = vld [vmem:[#allocation5 + $0x90] sm:$0xff]
    %v293 = vld [vmem:[#allocation5 + $0x98] sm:$0xff]
    %v294 = vld [vmem:[#allocation5 + $0xa0] sm:$0xff]
    %v295 = vld [vmem:[#allocation5 + $0xa8] sm:$0xff]
    %v296 = vld [vmem:[#allocation5 + $0xb0] sm:$0xff]
    %v297 = vld [vmem:[#allocation5 + $0xb8] sm:$0xff]
    %v298 = vld [vmem:[#allocation5 + $0xc0] sm:$0xff]
    %v299 = vld [vmem:[#allocation5 + $0xc8] sm:$0xff]
    %v300 = vld [vmem:[#allocation5 + $0xd0] sm:$0xff]
    %v301 = vld [vmem:[#allocation5 + $0xd8] sm:$0xff]
    %v302 = vld [vmem:[#allocation5 + $0xe0] sm:$0xff]
    %v303 = vld [vmem:[#allocation5 + $0xe8] sm:$0xff]
    %v304 = vld [vmem:[#allocation5 + $0xf0] sm:$0xff]
    %v305 = vld [vmem:[#allocation5 + $0xf8] sm:$0xff]
    %306 = vmatprep.subr.mxu0 0.0
    %307 = vmatpush1.msra.mxu0 %v290
    %308 = vmatprep.subr.mxu0 0.0
    %309 = vmatpush1.msra.mxu0 %v291
    %310 = vmatprep.subr.mxu0 0.0
    %311 = vmatpush1.msra.mxu0 %v292
    %312 = vmatprep.subr.mxu0 0.0
    %313 = vmatpush1.msra.mxu0 %v293
    %314 = vmatprep.subr.mxu0 0.0
    %315 = vmatpush1.msra.mxu0 %v294
    %316 = vmatprep.subr.mxu0 0.0
    %317 = vmatpush1.msra.mxu0 %v295
    %318 = vmatprep.subr.mxu0 0.0
    %319 = vmatpush1.msra.mxu0 %v296
    %320 = vmatprep.subr.mxu0 0.0
    %321 = vmatpush1.msra.mxu0 %v297
    %322 = vmatprep.subr.mxu0 0.0
    %323 = vmatpush1.msra.mxu0 %v298
    %324 = vmatprep.subr.mxu0 0.0
    %325 = vmatpush1.msra.mxu0 %v299
    %326 = vmatprep.subr.mxu0 0.0
    %327 = vmatpush1.msra.mxu0 %v300
    %328 = vmatprep.subr.mxu0 0.0
    %329 = vmatpush1.msra.mxu0 %v301
    %330 = vmatprep.subr.mxu0 0.0
    %331 = vmatpush1.msra.mxu0 %v302
    %332 = vmatprep.subr.mxu0 0.0
    %333 = vmatpush1.msra.mxu0 %v303
    %334 = vmatprep.subr.mxu0 0.0
    %335 = vmatpush1.msra.mxu0 %v304
    %336 = vmatprep.subr.mxu0 0.0
    %337 = vmatpush1.msra.mxu0 %v305
    %338 = vmatprep.subr.mxu0 0.0
    %339 = vmatpush1.msra.mxu0 0.0
    %340 = vmatprep.subr.mxu0 0.0
    %341 = vmatpush1.msra.mxu0 0.0
    %342 = vmatprep.subr.mxu0 0.0
    %343 = vmatpush1.msra.mxu0 0.0
    %344 = vmatprep.subr.mxu0 0.0
    %345 = vmatpush1.msra.mxu0 0.0
    %346 = vmatprep.subr.mxu0 0.0
    %347 = vmatpush1.msra.mxu0 0.0
    %348 = vmatprep.subr.mxu0 0.0
    %349 = vmatpush1.msra.mxu0 0.0
    %350 = vmatprep.subr.mxu0 0.0
    %351 = vmatpush1.msra.mxu0 0.0
    %352 = vmatprep.subr.mxu0 0.0
    %353 = vmatpush1.msra.mxu0 0.0
    %354 = vmatprep.subr.mxu0 0.0
    %355 = vmatpush1.msra.mxu0 0.0
    %356 = vmatprep.subr.mxu0 0.0
    %357 = vmatpush1.msra.mxu0 0.0
    %358 = vmatprep.subr.mxu0 0.0
    %359 = vmatpush1.msra.mxu0 0.0
    %360 = vmatprep.subr.mxu0 0.0
    %361 = vmatpush1.msra.mxu0 0.0
    %362 = vmatprep.subr.mxu0 0.0
    %363 = vmatpush1.msra.mxu0 0.0
    %364 = vmatprep.subr.mxu0 0.0
    %365 = vmatpush1.msra.mxu0 0.0
    %366 = vmatprep.subr.mxu0 0.0
    %367 = vmatpush1.msra.mxu0 0.0
    %368 = vmatprep.subr.mxu0 0.0
    %369 = vmatpush1.msra.mxu0 0.0
    %370 = vmatprep.mubr.f32.mxu0 0.0
    %371 = vmatmul.mubr.f32.gmra.mrb[0].mxu0 %v269
    %v372 = vpop.f32.mrb[0].mxu0
    %v373 = vadd.f32 0.0, %v372
    %v374 = vpop.f32.mrb[0].mxu0
    %375 = vdwg.mxu0
    %376 = vmatprep.subr.mxu0 0.0
    %377 = vmatpush1.msra.mxu0 %v68
    %378 = vmatprep.subr.mxu0 0.0
    %379 = vmatpush1.msra.mxu0 %v69
    %380 = vmatprep.subr.mxu0 0.0
    %381 = vmatpush1.msra.mxu0 %v70
    %382 = vmatprep.subr.mxu0 0.0
    %383 = vmatpush1.msra.mxu0 %v71
    %384 = vmatprep.subr.mxu0 0.0
    %385 = vmatpush1.msra.mxu0 %v72
    %386 = vmatprep.subr.mxu0 0.0
    %387 = vmatpush1.msra.mxu0 %v73
    %388 = vmatprep.subr.mxu0 0.0
    %389 = vmatpush1.msra.mxu0 %v74
    %390 = vmatprep.subr.mxu0 0.0
    %391 = vmatpush1.msra.mxu0 %v75
    %392 = vmatprep.subr.mxu0 0.0
    %393 = vmatpush1.msra.mxu0 %v76
    %394 = vmatprep.subr.mxu0 0.0
    %395 = vmatpush1.msra.mxu0 %v77
    %396 = vmatprep.subr.mxu0 0.0
    %397 = vmatpush1.msra.mxu0 %v78
    %398 = vmatprep.subr.mxu0 0.0
    %399 = vmatpush1.msra.mxu0 %v79
    %400 = vmatprep.subr.mxu0 0.0
    %401 = vmatpush1.msra.mxu0 %v80
    %402 = vmatprep.subr.mxu0 0.0
    %403 = vmatpush1.msra.mxu0 %v81
    %404 = vmatprep.subr.mxu0 0.0
    %405 = vmatpush1.msra.mxu0 %v82
    %406 = vmatprep.subr.mxu0 0.0
    %407 = vmatpush1.msra.mxu0 %v83
    %408 = vmatprep.subr.mxu0 0.0
    %409 = vmatpush1.msra.mxu0 0.0
    %410 = vmatprep.subr.mxu0 0.0
    %411 = vmatpush1.msra.mxu0 0.0
    %412 = vmatprep.subr.mxu0 0.0
    %413 = vmatpush1.msra.mxu0 0.0
    %414 = vmatprep.subr.mxu0 0.0
    %415 = vmatpush1.msra.mxu0 0.0
    %416 = vmatprep.subr.mxu0 0.0
    %417 = vmatpush1.msra.mxu0 0.0
    %418 = vmatprep.subr.mxu0 0.0
    %419 = vmatpush1.msra.mxu0 0.0
    %420 = vmatprep.subr.mxu0 0.0
    %421 = vmatpush1.msra.mxu0 0.0
    %422 = vmatprep.subr.mxu0 0.0
    %423 = vmatpush1.msra.mxu0 0.0
    %424 = vmatprep.subr.mxu0 0.0
    %425 = vmatpush1.msra.mxu0 0.0
    %426 = vmatprep.subr.mxu0 0.0
    %427 = vmatpush1.msra.mxu0 0.0
    %428 = vmatprep.subr.mxu0 0.0
    %429 = vmatpush1.msra.mxu0 0.0
    %430 = vmatprep.subr.mxu0 0.0
    %431 = vmatpush1.msra.mxu0 0.0
    %432 = vmatprep.subr.mxu0 0.0
    %433 = vmatpush1.msra.mxu0 0.0
    %434 = vmatprep.subr.mxu0 0.0
    %435 = vmatpush1.msra.mxu0 0.0
    %436 = vmatprep.subr.mxu0 0.0
    %437 = vmatpush1.msra.mxu0 0.0
    %438 = vmatprep.subr.mxu0 0.0
    %439 = vmatpush1.msra.mxu0 0.0
    %440 = vmatprep.mubr.f32.mxu0 0.0
    %441 = vmatmul.mubr.f32.gmra.mrb[0].mxu0 %v67
    %v442 = vpop.f32.mrb[0].mxu0
    %v443 = vadd.f32 %v373, %v442
    %v444 = vpop.f32.mrb[0].mxu0
    %445 = vdwg.mxu0
    %v446 = vld [vmem:[#allocation5 + $0x100] sm:$0xff]
    %v447 = vld [vmem:[#allocation5 + $0x108] sm:$0xff]
    %v448 = vld [vmem:[#allocation5 + $0x110] sm:$0xff]
    %v449 = vld [vmem:[#allocation5 + $0x118] sm:$0xff]
    %v450 = vld [vmem:[#allocation5 + $0x120] sm:$0xff]
    %v451 = vld [vmem:[#allocation5 + $0x128] sm:$0xff]
    %v452 = vld [vmem:[#allocation5 + $0x130] sm:$0xff]
    %v453 = vld [vmem:[#allocation5 + $0x138] sm:$0xff]
    %v454 = vld [vmem:[#allocation5 + $0x140] sm:$0xff]
    %v455 = vld [vmem:[#allocation5 + $0x148] sm:$0xff]
    %v456 = vld [vmem:[#allocation5 + $0x150] sm:$0xff]
    %v457 = vld [vmem:[#allocation5 + $0x158] sm:$0xff]
    %v458 = vld [vmem:[#allocation5 + $0x160] sm:$0xff]
    %v459 = vld [vmem:[#allocation5 + $0x168] sm:$0xff]
    %v460 = vld [vmem:[#allocation5 + $0x170] sm:$0xff]
    %v461 = vld [vmem:[#allocation5 + $0x178] sm:$0xff]
    %462 = vmatprep.subr.mxu0 0.0
    %463 = vmatpush1.msra.mxu0 %v446
    %464 = vmatprep.subr.mxu0 0.0
    %465 = vmatpush1.msra.mxu0 %v447
    %466 = vmatprep.subr.mxu0 0.0
    %467 = vmatpush1.msra.mxu0 %v448
    %468 = vmatprep.subr.mxu0 0.0
    %469 = vmatpush1.msra.mxu0 %v449
    %470 = vmatprep.subr.mxu0 0.0
    %471 = vmatpush1.msra.mxu0 %v450
    %472 = vmatprep.subr.mxu0 0.0
    %473 = vmatpush1.msra.mxu0 %v451
    %474 = vmatprep.subr.mxu0 0.0
    %475 = vmatpush1.msra.mxu0 %v452
    %476 = vmatprep.subr.mxu0 0.0
    %477 = vmatpush1.msra.mxu0 %v453
    %478 = vmatprep.subr.mxu0 0.0
    %479 = vmatpush1.msra.mxu0 %v454
    %480 = vmatprep.subr.mxu0 0.0
    %481 = vmatpush1.msra.mxu0 %v455
    %482 = vmatprep.subr.mxu0 0.0
    %483 = vmatpush1.msra.mxu0 %v456
    %484 = vmatprep.subr.mxu0 0.0
    %485 = vmatpush1.msra.mxu0 %v457
    %486 = vmatprep.subr.mxu0 0.0
    %487 = vmatpush1.msra.mxu0 %v458
    %488 = vmatprep.subr.mxu0 0.0
    %489 = vmatpush1.msra.mxu0 %v459
    %490 = vmatprep.subr.mxu0 0.0
    %491 = vmatpush1.msra.mxu0 %v460
    %492 = vmatprep.subr.mxu0 0.0
    %493 = vmatpush1.msra.mxu0 %v461
    %494 = vmatprep.subr.mxu0 0.0
    %495 = vmatpush1.msra.mxu0 0.0
    %496 = vmatprep.subr.mxu0 0.0
    %497 = vmatpush1.msra.mxu0 0.0
    %498 = vmatprep.subr.mxu0 0.0
    %499 = vmatpush1.msra.mxu0 0.0
    %500 = vmatprep.subr.mxu0 0.0
    %501 = vmatpush1.msra.mxu0 0.0
    %502 = vmatprep.subr.mxu0 0.0
    %503 = vmatpush1.msra.mxu0 0.0
    %504 = vmatprep.subr.mxu0 0.0
    %505 = vmatpush1.msra.mxu0 0.0
    %506 = vmatprep.subr.mxu0 0.0
    %507 = vmatpush1.msra.mxu0 0.0
    %508 = vmatprep.subr.mxu0 0.0
    %509 = vmatpush1.msra.mxu0 0.0
    %510 = vmatprep.subr.mxu0 0.0
    %511 = vmatpush1.msra.mxu0 0.0
    %512 = vmatprep.subr.mxu0 0.0
    %513 = vmatpush1.msra.mxu0 0.0
    %514 = vmatprep.subr.mxu0 0.0
    %515 = vmatpush1.msra.mxu0 0.0
    %516 = vmatprep.subr.mxu0 0.0
    %517 = vmatpush1.msra.mxu0 0.0
    %518 = vmatprep.subr.mxu0 0.0
    %519 = vmatpush1.msra.mxu0 0.0
    %520 = vmatprep.subr.mxu0 0.0
    %521 = vmatpush1.msra.mxu0 0.0
    %522 = vmatprep.subr.mxu0 0.0
    %523 = vmatpush1.msra.mxu0 0.0
    %524 = vmatprep.subr.mxu0 0.0
    %525 = vmatpush1.msra.mxu0 0.0
    %526 = vmatprep.mubr.f32.mxu0 0.0
    %527 = vmatmul.mubr.f32.gmra.mrb[0].mxu0 %v273
    %v528 = vpop.f32.mrb[0].mxu0
    %v529 = vadd.f32 0.0, %v528
    %v530 = vpop.f32.mrb[0].mxu0
    %531 = vdwg.mxu0
    %v532 = vadd.f32 %v443, %v529
    %v533 = vld [vmem:[#allocation5 + $0x180] sm:$0xff]
    %v534 = vld [vmem:[#allocation5 + $0x188] sm:$0xff]
    %v535 = vld [vmem:[#allocation5 + $0x190] sm:$0xff]
    %v536 = vld [vmem:[#allocation5 + $0x198] sm:$0xff]
    %v537 = vld [vmem:[#allocation5 + $0x1a0] sm:$0xff]
    %v538 = vld [vmem:[#allocation5 + $0x1a8] sm:$0xff]
    %v539 = vld [vmem:[#allocation5 + $0x1b0] sm:$0xff]
    %v540 = vld [vmem:[#allocation5 + $0x1b8] sm:$0xff]
    %v541 = vld [vmem:[#allocation5 + $0x1c0] sm:$0xff]
    %v542 = vld [vmem:[#allocation5 + $0x1c8] sm:$0xff]
    %v543 = vld [vmem:[#allocation5 + $0x1d0] sm:$0xff]
    %v544 = vld [vmem:[#allocation5 + $0x1d8] sm:$0xff]
    %v545 = vld [vmem:[#allocation5 + $0x1e0] sm:$0xff]
    %v546 = vld [vmem:[#allocation5 + $0x1e8] sm:$0xff]
    %v547 = vld [vmem:[#allocation5 + $0x1f0] sm:$0xff]
    %v548 = vld [vmem:[#allocation5 + $0x1f8] sm:$0xff]
    %549 = vmatprep.subr.mxu0 0.0
    %550 = vmatpush1.msra.mxu0 %v533
    %551 = vmatprep.subr.mxu0 0.0
    %552 = vmatpush1.msra.mxu0 %v534
    %553 = vmatprep.subr.mxu0 0.0
    %554 = vmatpush1.msra.mxu0 %v535
    %555 = vmatprep.subr.mxu0 0.0
    %556 = vmatpush1.msra.mxu0 %v536
    %557 = vmatprep.subr.mxu0 0.0
    %558 = vmatpush1.msra.mxu0 %v537
    %559 = vmatprep.subr.mxu0 0.0
    %560 = vmatpush1.msra.mxu0 %v538
    %561 = vmatprep.subr.mxu0 0.0
    %562 = vmatpush1.msra.mxu0 %v539
    %563 = vmatprep.subr.mxu0 0.0
    %564 = vmatpush1.msra.mxu0 %v540
    %565 = vmatprep.subr.mxu0 0.0
    %566 = vmatpush1.msra.mxu0 %v541
    %567 = vmatprep.subr.mxu0 0.0
    %568 = vmatpush1.msra.mxu0 %v542
    %569 = vmatprep.subr.mxu0 0.0
    %570 = vmatpush1.msra.mxu0 %v543
    %571 = vmatprep.subr.mxu0 0.0
    %572 = vmatpush1.msra.mxu0 %v544
    %573 = vmatprep.subr.mxu0 0.0
    %574 = vmatpush1.msra.mxu0 %v545
    %575 = vmatprep.subr.mxu0 0.0
    %576 = vmatpush1.msra.mxu0 %v546
    %577 = vmatprep.subr.mxu0 0.0
    %578 = vmatpush1.msra.mxu0 %v547
    %579 = vmatprep.subr.mxu0 0.0
    %580 = vmatpush1.msra.mxu0 %v548
    %581 = vmatprep.subr.mxu0 0.0
    %582 = vmatpush1.msra.mxu0 0.0
    %583 = vmatprep.subr.mxu0 0.0
    %584 = vmatpush1.msra.mxu0 0.0
    %585 = vmatprep.subr.mxu0 0.0
    %586 = vmatpush1.msra.mxu0 0.0
    %587 = vmatprep.subr.mxu0 0.0
    %588 = vmatpush1.msra.mxu0 0.0
    %589 = vmatprep.subr.mxu0 0.0
    %590 = vmatpush1.msra.mxu0 0.0
    %591 = vmatprep.subr.mxu0 0.0
    %592 = vmatpush1.msra.mxu0 0.0
    %593 = vmatprep.subr.mxu0 0.0
    %594 = vmatpush1.msra.mxu0 0.0
    %595 = vmatprep.subr.mxu0 0.0
    %596 = vmatpush1.msra.mxu0 0.0
    %597 = vmatprep.subr.mxu0 0.0
    %598 = vmatpush1.msra.mxu0 0.0
    %599 = vmatprep.subr.mxu0 0.0
    %600 = vmatpush1.msra.mxu0 0.0
    %601 = vmatprep.subr.mxu0 0.0
    %602 = vmatpush1.msra.mxu0 0.0
    %603 = vmatprep.subr.mxu0 0.0
    %604 = vmatpush1.msra.mxu0 0.0
    %605 = vmatprep.subr.mxu0 0.0
    %606 = vmatpush1.msra.mxu0 0.0
    %607 = vmatprep.subr.mxu0 0.0
    %608 = vmatpush1.msra.mxu0 0.0
    %609 = vmatprep.subr.mxu0 0.0
    %610 = vmatpush1.msra.mxu0 0.0
    %611 = vmatprep.subr.mxu0 0.0
    %612 = vmatpush1.msra.mxu0 0.0
    %613 = vmatprep.mubr.f32.mxu0 0.0
    %614 = vmatmul.mubr.f32.gmra.mrb[0].mxu0 %v277
    %v615 = vpop.f32.mrb[0].mxu0
    %v616 = vadd.f32 0.0, %v615
    %v617 = vpop.f32.mrb[0].mxu0
    %618 = vdwg.mxu0
    %v619 = vadd.f32 %v532, %v616
    %v620 = vld [vmem:[#allocation5 + $0x200] sm:$0xff]
    %v621 = vld [vmem:[#allocation5 + $0x208] sm:$0xff]
    %v622 = vld [vmem:[#allocation5 + $0x210] sm:$0xff]
    %v623 = vld [vmem:[#allocation5 + $0x218] sm:$0xff]
    %v624 = vld [vmem:[#allocation5 + $0x220] sm:$0xff]
    %v625 = vld [vmem:[#allocation5 + $0x228] sm:$0xff]
    %v626 = vld [vmem:[#allocation5 + $0x230] sm:$0xff]
    %v627 = vld [vmem:[#allocation5 + $0x238] sm:$0xff]
    %v628 = vld [vmem:[#allocation5 + $0x240] sm:$0xff]
    %v629 = vld [vmem:[#allocation5 + $0x248] sm:$0xff]
    %v630 = vld [vmem:[#allocation5 + $0x250] sm:$0xff]
    %v631 = vld [vmem:[#allocation5 + $0x258] sm:$0xff]
    %v632 = vld [vmem:[#allocation5 + $0x260] sm:$0xff]
    %v633 = vld [vmem:[#allocation5 + $0x268] sm:$0xff]
    %v634 = vld [vmem:[#allocation5 + $0x270] sm:$0xff]
    %v635 = vld [vmem:[#allocation5 + $0x278] sm:$0xff]
    %636 = vmatprep.subr.mxu0 0.0
    %637 = vmatpush1.msra.mxu0 %v620
    %638 = vmatprep.subr.mxu0 0.0
    %639 = vmatpush1.msra.mxu0 %v621
    %640 = vmatprep.subr.mxu0 0.0
    %641 = vmatpush1.msra.mxu0 %v622
    %642 = vmatprep.subr.mxu0 0.0
    %643 = vmatpush1.msra.mxu0 %v623
    %644 = vmatprep.subr.mxu0 0.0
    %645 = vmatpush1.msra.mxu0 %v624
    %646 = vmatprep.subr.mxu0 0.0
    %647 = vmatpush1.msra.mxu0 %v625
    %648 = vmatprep.subr.mxu0 0.0
    %649 = vmatpush1.msra.mxu0 %v626
    %650 = vmatprep.subr.mxu0 0.0
    %651 = vmatpush1.msra.mxu0 %v627
    %652 = vmatprep.subr.mxu0 0.0
    %653 = vmatpush1.msra.mxu0 %v628
    %654 = vmatprep.subr.mxu0 0.0
    %655 = vmatpush1.msra.mxu0 %v629
    %656 = vmatprep.subr.mxu0 0.0
    %657 = vmatpush1.msra.mxu0 %v630
    %658 = vmatprep.subr.mxu0 0.0
    %659 = vmatpush1.msra.mxu0 %v631
    %660 = vmatprep.subr.mxu0 0.0
    %661 = vmatpush1.msra.mxu0 %v632
    %662 = vmatprep.subr.mxu0 0.0
    %663 = vmatpush1.msra.mxu0 %v633
    %664 = vmatprep.subr.mxu0 0.0
    %665 = vmatpush1.msra.mxu0 %v634
    %666 = vmatprep.subr.mxu0 0.0
    %667 = vmatpush1.msra.mxu0 %v635
    %668 = vmatprep.subr.mxu0 0.0
    %669 = vmatpush1.msra.mxu0 0.0
    %670 = vmatprep.subr.mxu0 0.0
    %671 = vmatpush1.msra.mxu0 0.0
    %672 = vmatprep.subr.mxu0 0.0
    %673 = vmatpush1.msra.mxu0 0.0
    %674 = vmatprep.subr.mxu0 0.0
    %675 = vmatpush1.msra.mxu0 0.0
    %676 = vmatprep.subr.mxu0 0.0
    %677 = vmatpush1.msra.mxu0 0.0
    %678 = vmatprep.subr.mxu0 0.0
    %679 = vmatpush1.msra.mxu0 0.0
    %680 = vmatprep.subr.mxu0 0.0
    %681 = vmatpush1.msra.mxu0 0.0
    %682 = vmatprep.subr.mxu0 0.0
    %683 = vmatpush1.msra.mxu0 0.0
    %684 = vmatprep.subr.mxu0 0.0
    %685 = vmatpush1.msra.mxu0 0.0
    %686 = vmatprep.subr.mxu0 0.0
    %687 = vmatpush1.msra.mxu0 0.0
    %688 = vmatprep.subr.mxu0 0.0
    %689 = vmatpush1.msra.mxu0 0.0
    %690 = vmatprep.subr.mxu0 0.0
    %691 = vmatpush1.msra.mxu0 0.0
    %692 = vmatprep.subr.mxu0 0.0
    %693 = vmatpush1.msra.mxu0 0.0
    %694 = vmatprep.subr.mxu0 0.0
    %695 = vmatpush1.msra.mxu0 0.0
    %696 = vmatprep.subr.mxu0 0.0
    %697 = vmatpush1.msra.mxu0 0.0
    %698 = vmatprep.subr.mxu0 0.0
    %699 = vmatpush1.msra.mxu0 0.0
    %700 = vmatprep.mubr.f32.mxu0 0.0
    %701 = vmatmul.mubr.f32.gmra.mrb[0].mxu0 %v281
    %v702 = vpop.f32.mrb[0].mxu0
    %v703 = vadd.f32 0.0, %v702
    %v704 = vpop.f32.mrb[0].mxu0
    %705 = vdwg.mxu0
    %v706 = vadd.f32 %v619, %v703
    %v707 = vld [vmem:[#allocation5 + $0x280] sm:$0xff]
    %v708 = vld [vmem:[#allocation5 + $0x288] sm:$0xff]
    %v709 = vld [vmem:[#allocation5 + $0x290] sm:$0xff]
    %v710 = vld [vmem:[#allocation5 + $0x298] sm:$0xff]
    %v711 = vld [vmem:[#allocation5 + $0x2a0] sm:$0xff]
    %v712 = vld [vmem:[#allocation5 + $0x2a8] sm:$0xff]
    %v713 = vld [vmem:[#allocation5 + $0x2b0] sm:$0xff]
    %v714 = vld [vmem:[#allocation5 + $0x2b8] sm:$0xff]
    %v715 = vld [vmem:[#allocation5 + $0x2c0] sm:$0xff]
    %v716 = vld [vmem:[#allocation5 + $0x2c8] sm:$0xff]
    %v717 = vld [vmem:[#allocation5 + $0x2d0] sm:$0xff]
    %v718 = vld [vmem:[#allocation5 + $0x2d8] sm:$0xff]
    %v719 = vld [vmem:[#allocation5 + $0x2e0] sm:$0xff]
    %v720 = vld [vmem:[#allocation5 + $0x2e8] sm:$0xff]
    %v721 = vld [vmem:[#allocation5 + $0x2f0] sm:$0xff]
    %v722 = vld [vmem:[#allocation5 + $0x2f8] sm:$0xff]
    %723 = vmatprep.subr.mxu0 0.0
    %724 = vmatpush1.msra.mxu0 %v707
    %725 = vmatprep.subr.mxu0 0.0
    %726 = vmatpush1.msra.mxu0 %v708
    %727 = vmatprep.subr.mxu0 0.0
    %728 = vmatpush1.msra.mxu0 %v709
    %729 = vmatprep.subr.mxu0 0.0
    %730 = vmatpush1.msra.mxu0 %v710
    %731 = vmatprep.subr.mxu0 0.0
    %732 = vmatpush1.msra.mxu0 %v711
    %733 = vmatprep.subr.mxu0 0.0
    %734 = vmatpush1.msra.mxu0 %v712
    %735 = vmatprep.subr.mxu0 0.0
    %736 = vmatpush1.msra.mxu0 %v713
    %737 = vmatprep.subr.mxu0 0.0
    %738 = vmatpush1.msra.mxu0 %v714
    %739 = vmatprep.subr.mxu0 0.0
    %740 = vmatpush1.msra.mxu0 %v715
    %741 = vmatprep.subr.mxu0 0.0
    %742 = vmatpush1.msra.mxu0 %v716
    %743 = vmatprep.subr.mxu0 0.0
    %744 = vmatpush1.msra.mxu0 %v717
    %745 = vmatprep.subr.mxu0 0.0
    %746 = vmatpush1.msra.mxu0 %v718
    %747 = vmatprep.subr.mxu0 0.0
    %748 = vmatpush1.msra.mxu0 %v719
    %749 = vmatprep.subr.mxu0 0.0
    %750 = vmatpush1.msra.mxu0 %v720
    %751 = vmatprep.subr.mxu0 0.0
    %752 = vmatpush1.msra.mxu0 %v721
    %753 = vmatprep.subr.mxu0 0.0
    %754 = vmatpush1.msra.mxu0 %v722
    %755 = vmatprep.subr.mxu0 0.0
    %756 = vmatpush1.msra.mxu0 0.0
    %757 = vmatprep.subr.mxu0 0.0
    %758 = vmatpush1.msra.mxu0 0.0
    %759 = vmatprep.subr.mxu0 0.0
    %760 = vmatpush1.msra.mxu0 0.0
    %761 = vmatprep.subr.mxu0 0.0
    %762 = vmatpush1.msra.mxu0 0.0
    %763 = vmatprep.subr.mxu0 0.0
    %764 = vmatpush1.msra.mxu0 0.0
    %765 = vmatprep.subr.mxu0 0.0
    %766 = vmatpush1.msra.mxu0 0.0
    %767 = vmatprep.subr.mxu0 0.0
    %768 = vmatpush1.msra.mxu0 0.0
    %769 = vmatprep.subr.mxu0 0.0
    %770 = vmatpush1.msra.mxu0 0.0
    %771 = vmatprep.subr.mxu0 0.0
    %772 = vmatpush1.msra.mxu0 0.0
    %773 = vmatprep.subr.mxu0 0.0
    %774 = vmatpush1.msra.mxu0 0.0
    %775 = vmatprep.subr.mxu0 0.0
    %776 = vmatpush1.msra.mxu0 0.0
    %777 = vmatprep.subr.mxu0 0.0
    %778 = vmatpush1.msra.mxu0 0.0
    %779 = vmatprep.subr.mxu0 0.0
    %780 = vmatpush1.msra.mxu0 0.0
    %781 = vmatprep.subr.mxu0 0.0
    %782 = vmatpush1.msra.mxu0 0.0
    %783 = vmatprep.subr.mxu0 0.0
    %784 = vmatpush1.msra.mxu0 0.0
    %785 = vmatprep.subr.mxu0 0.0
    %786 = vmatpush1.msra.mxu0 0.0
    %787 = vmatprep.mubr.f32.mxu0 0.0
    %788 = vmatmul.mubr.f32.gmra.mrb[0].mxu0 %v285
    %v789 = vpop.f32.mrb[0].mxu0
    %v790 = vadd.f32 0.0, %v789
    %v791 = vpop.f32.mrb[0].mxu0
    %792 = vdwg.mxu0
    %v793 = vadd.f32 %v706, %v790
    %v794 = vld [vmem:[#allocation5 + $0x300] sm:$0xff]
    %v795 = vld [vmem:[#allocation5 + $0x308] sm:$0xff]
    %v796 = vld [vmem:[#allocation5 + $0x310] sm:$0xff]
    %v797 = vld [vmem:[#allocation5 + $0x318] sm:$0xff]
    %v798 = vld [vmem:[#allocation5 + $0x320] sm:$0xff]
    %v799 = vld [vmem:[#allocation5 + $0x328] sm:$0xff]
    %v800 = vld [vmem:[#allocation5 + $0x330] sm:$0xff]
    %v801 = vld [vmem:[#allocation5 + $0x338] sm:$0xff]
    %v802 = vld [vmem:[#allocation5 + $0x340] sm:$0xff]
    %v803 = vld [vmem:[#allocation5 + $0x348] sm:$0xff]
    %v804 = vld [vmem:[#allocation5 + $0x350] sm:$0xff]
    %v805 = vld [vmem:[#allocation5 + $0x358] sm:$0xff]
    %v806 = vld [vmem:[#allocation5 + $0x360] sm:$0xff]
    %v807 = vld [vmem:[#allocation5 + $0x368] sm:$0xff]
    %v808 = vld [vmem:[#allocation5 + $0x370] sm:$0xff]
    %v809 = vld [vmem:[#allocation5 + $0x378] sm:$0xff]
    %810 = vmatprep.subr.mxu0 0.0
    %811 = vmatpush1.msra.mxu0 %v794
    %812 = vmatprep.subr.mxu0 0.0
    %813 = vmatpush1.msra.mxu0 %v795
    %814 = vmatprep.subr.mxu0 0.0
    %815 = vmatpush1.msra.mxu0 %v796
    %816 = vmatprep.subr.mxu0 0.0
    %817 = vmatpush1.msra.mxu0 %v797
    %818 = vmatprep.subr.mxu0 0.0
    %819 = vmatpush1.msra.mxu0 %v798
    %820 = vmatprep.subr.mxu0 0.0
    %821 = vmatpush1.msra.mxu0 %v799
    %822 = vmatprep.subr.mxu0 0.0
    %823 = vmatpush1.msra.mxu0 %v800
    %824 = vmatprep.subr.mxu0 0.0
    %825 = vmatpush1.msra.mxu0 %v801
    %826 = vmatprep.subr.mxu0 0.0
    %827 = vmatpush1.msra.mxu0 %v802
    %828 = vmatprep.subr.mxu0 0.0
    %829 = vmatpush1.msra.mxu0 %v803
    %830 = vmatprep.subr.mxu0 0.0
    %831 = vmatpush1.msra.mxu0 %v804
    %832 = vmatprep.subr.mxu0 0.0
    %833 = vmatpush1.msra.mxu0 %v805
    %834 = vmatprep.subr.mxu0 0.0
    %835 = vmatpush1.msra.mxu0 %v806
    %836 = vmatprep.subr.mxu0 0.0
    %837 = vmatpush1.msra.mxu0 %v807
    %838 = vmatprep.subr.mxu0 0.0
    %839 = vmatpush1.msra.mxu0 %v808
    %840 = vmatprep.subr.mxu0 0.0
    %841 = vmatpush1.msra.mxu0 %v809
    %842 = vmatprep.subr.mxu0 0.0
    %843 = vmatpush1.msra.mxu0 0.0
    %844 = vmatprep.subr.mxu0 0.0
    %845 = vmatpush1.msra.mxu0 0.0
    %846 = vmatprep.subr.mxu0 0.0
    %847 = vmatpush1.msra.mxu0 0.0
    %848 = vmatprep.subr.mxu0 0.0
    %849 = vmatpush1.msra.mxu0 0.0
    %850 = vmatprep.subr.mxu0 0.0
    %851 = vmatpush1.msra.mxu0 0.0
    %852 = vmatprep.subr.mxu0 0.0
    %853 = vmatpush1.msra.mxu0 0.0
    %854 = vmatprep.subr.mxu0 0.0
    %855 = vmatpush1.msra.mxu0 0.0
    %856 = vmatprep.subr.mxu0 0.0
    %857 = vmatpush1.msra.mxu0 0.0
    %858 = vmatprep.subr.mxu0 0.0
    %859 = vmatpush1.msra.mxu0 0.0
    %860 = vmatprep.subr.mxu0 0.0
    %861 = vmatpush1.msra.mxu0 0.0
    %862 = vmatprep.subr.mxu0 0.0
    %863 = vmatpush1.msra.mxu0 0.0
    %864 = vmatprep.subr.mxu0 0.0
    %865 = vmatpush1.msra.mxu0 0.0
    %866 = vmatprep.subr.mxu0 0.0
    %867 = vmatpush1.msra.mxu0 0.0
    %868 = vmatprep.subr.mxu0 0.0
    %869 = vmatpush1.msra.mxu0 0.0
    %870 = vmatprep.subr.mxu0 0.0
    %871 = vmatpush1.msra.mxu0 0.0
    %872 = vmatprep.subr.mxu0 0.0
    %873 = vmatpush1.msra.mxu0 0.0
    %874 = vmatprep.mubr.f32.mxu0 0.0
    %875 = vmatmul.mubr.f32.gmra.mrb[0].mxu0 %v289
    %v876 = vpop.f32.mrb[0].mxu0
    %v877 = vadd.f32 0.0, %v876
    %v878 = vpop.f32.mrb[0].mxu0
    %879 = vdwg.mxu0
    %v880 = vadd.f32 %v793, %v877
    %v881 = vld [vmem:[%s3] sm:$0xff]
    %v882 = vld [vmem:[%s3 + $0x8] sm:$0xff]
    %v883 = vld [vmem:[%s3 + $0x10] sm:$0xff]
    %v884 = vmul.f32 %v880, 0.01
    %v885 = vmax.f32 %v880, %v884
    %v886 = vld [vmem:[#allocation7] sm:$0xff]
    %v887 = vld [vmem:[#allocation7 + $0x8] sm:$0xff]
    %v888 = vld [vmem:[#allocation7 + $0x10] sm:$0xff]
    %v889 = vld [vmem:[#allocation7 + $0x18] sm:$0xff]
    %v890 = vld [vmem:[#allocation7 + $0x20] sm:$0xff]
    %v891 = vld [vmem:[#allocation7 + $0x28] sm:$0xff]
    %v892 = vld [vmem:[#allocation7 + $0x30] sm:$0xff]
    %v893 = vld [vmem:[#allocation7 + $0x38] sm:$0xff]
    %v894 = vld [vmem:[#allocation7 + $0x40] sm:$0xff]
    %v895 = vld [vmem:[#allocation7 + $0x48] sm:$0xff]
    %v896 = vld [vmem:[#allocation7 + $0x50] sm:$0xff]
    %v897 = vld [vmem:[#allocation7 + $0x58] sm:$0xff]
    %v898 = vld [vmem:[#allocation7 + $0x60] sm:$0xff]
    %v899 = vld [vmem:[#allocation7 + $0x68] sm:$0xff]
    %v900 = vld [vmem:[#allocation7 + $0x70] sm:$0xff]
    %v901 = vld [vmem:[#allocation7 + $0x78] sm:$0xff]
    %v902 = vlaneseq
    %v903 = vshrl.u32 %v902, 7
    %v904 = vsub.s32 0, %v903
    %v905 = vrot.slane %v881, %v904
    %vm906 = vcmp.ge.f32.partialorder %v880, %v905
    %v907 = vsel %vm906, 1, 0
    %v908 = vcvt.s32.f32 %v907
    %v909 = vlaneseq
    %v910 = vshrl.u32 %v909, 7
    %v911 = vsub.s32 1, %v910
    %v912 = vrot.slane %v881, %v911
    %vm913 = vcmp.ge.f32.partialorder %v880, %v912
    %v914 = vsel %vm913, 1, 0
    %v915 = vcvt.s32.f32 %v914
    %v916 = vlaneseq
    %v917 = vshrl.u32 %v916, 7
    %v918 = vsub.s32 2, %v917
    %v919 = vrot.slane %v881, %v918
    %vm920 = vcmp.ge.f32.partialorder %v880, %v919
    %v921 = vsel %vm920, 1, 0
    %v922 = vcvt.s32.f32 %v921
    %v923 = vlaneseq
    %v924 = vshrl.u32 %v923, 7
    %v925 = vsub.s32 3, %v924
    %v926 = vrot.slane %v881, %v925
    %vm927 = vcmp.ge.f32.partialorder %v880, %v926
    %v928 = vsel %vm927, 1, 0
    %v929 = vcvt.s32.f32 %v928
    %v930 = vlaneseq
    %v931 = vshrl.u32 %v930, 7
    %v932 = vsub.s32 4, %v931
    %v933 = vrot.slane %v881, %v932
    %vm934 = vcmp.ge.f32.partialorder %v880, %v933
    %v935 = vsel %vm934, 1, 0
    %v936 = vcvt.s32.f32 %v935
    %v937 = vlaneseq
    %v938 = vshrl.u32 %v937, 7
    %v939 = vsub.s32 5, %v938
    %v940 = vrot.slane %v881, %v939
    %vm941 = vcmp.ge.f32.partialorder %v880, %v940
    %v942 = vsel %vm941, 1, 0
    %v943 = vcvt.s32.f32 %v942
    %v944 = vlaneseq
    %v945 = vshrl.u32 %v944, 7
    %v946 = vsub.s32 6, %v945
    %v947 = vrot.slane %v881, %v946
    %vm948 = vcmp.ge.f32.partialorder %v880, %v947
    %v949 = vsel %vm948, 1, 0
    %v950 = vcvt.s32.f32 %v949
    %v951 = vlaneseq
    %v952 = vshrl.u32 %v951, 7
    %v953 = vsub.s32 7, %v952
    %v954 = vrot.slane %v881, %v953
    %vm955 = vcmp.ge.f32.partialorder %v880, %v954
    %v956 = vsel %vm955, 1, 0
    %v957 = vcvt.s32.f32 %v956
    %v958 = vlaneseq
    %v959 = vshrl.u32 %v958, 7
    %v960 = vsub.s32 0, %v959
    %v961 = vrot.slane %v882, %v960
    %vm962 = vcmp.ge.f32.partialorder %v880, %v961
    %v963 = vsel %vm962, 1, 0
    %v964 = vcvt.s32.f32 %v963
    %v965 = vsub.f32 %v908, %v915
    %v966 = vsub.f32 %v915, %v922
    %v967 = vsub.f32 %v922, %v929
    %v968 = vsub.f32 %v929, %v936
    %v969 = vsub.f32 %v936, %v943
    %v970 = vsub.f32 %v943, %v950
    %v971 = vsub.f32 %v950, %v957
    %v972 = vsub.f32 %v957, %v964
    %v973 = vsub.f32 %v880, %v905
    %v974 = vlaneseq
    %v975 = vshrl.u32 %v974, 7
    %v976 = vsub.s32 1, %v975
    %v977 = vrot.slane %v882, %v976
    %v978 = vmul.f32 %v973, %v977
    %v979 = vsub.f32 %v880, %v912
    %v980 = vlaneseq
    %v981 = vshrl.u32 %v980, 7
    %v982 = vsub.s32 2, %v981
    %v983 = vrot.slane %v882, %v982
    %v984 = vmul.f32 %v979, %v983
    %v985 = vsub.f32 %v880, %v919
    %v986 = vlaneseq
    %v987 = vshrl.u32 %v986, 7
    %v988 = vsub.s32 3, %v987
    %v989 = vrot.slane %v882, %v988
    %v990 = vmul.f32 %v985, %v989
    %v991 = vsub.f32 %v880, %v926
    %v992 = vlaneseq
    %v993 = vshrl.u32 %v992, 7
    %v994 = vsub.s32 4, %v993
    %v995 = vrot.slane %v882, %v994
    %v996 = vmul.f32 %v991, %v995
    %v997 = vsub.f32 %v880, %v933
    %v998 = vlaneseq
    %v999 = vshrl.u32 %v998, 7
    %v1000 = vsub.s32 5, %v999
    %v1001 = vrot.slane %v882, %v1000
    %v1002 = vmul.f32 %v997, %v1001
    %v1003 = vsub.f32 %v880, %v940
    %v1004 = vlaneseq
    %v1005 = vshrl.u32 %v1004, 7
    %v1006 = vsub.s32 6, %v1005
    %v1007 = vrot.slane %v882, %v1006
    %v1008 = vmul.f32 %v1003, %v1007
    %v1009 = vsub.f32 %v880, %v947
    %v1010 = vlaneseq
    %v1011 = vshrl.u32 %v1010, 7
    %v1012 = vsub.s32 7, %v1011
    %v1013 = vrot.slane %v882, %v1012
    %v1014 = vmul.f32 %v1009, %v1013
    %v1015 = vsub.f32 %v880, %v954
    %v1016 = vlaneseq
    %v1017 = vshrl.u32 %v1016, 7
    %v1018 = vsub.s32 0, %v1017
    %v1019 = vrot.slane %v883, %v1018
    %v1020 = vmul.f32 %v1015, %v1019
    %v1021 = vmul.f32 %v978, %v965
    %v1022 = vsub.f32 1.0, %v984
    %v1023 = vmul.f32 %v1022, %v966
    %v1024 = vadd.f32 %v1021, %v1023
    %v1025 = vmul.f32 %v984, %v966
    %v1026 = vsub.f32 1.0, %v990
    %v1027 = vmul.f32 %v1026, %v967
    %v1028 = vadd.f32 %v1025, %v1027
    %v1029 = vmul.f32 %v990, %v967
    %v1030 = vsub.f32 1.0, %v996
    %v1031 = vmul.f32 %v1030, %v968
    %v1032 = vadd.f32 %v1029, %v1031
    %v1033 = vmul.f32 %v996, %v968
    %v1034 = vsub.f32 1.0, %v1002
    %v1035 = vmul.f32 %v1034, %v969
    %v1036 = vadd.f32 %v1033, %v1035
    %v1037 = vmul.f32 %v1002, %v969
    %v1038 = vsub.f32 1.0, %v1008
    %v1039 = vmul.f32 %v1038, %v970
    %v1040 = vadd.f32 %v1037, %v1039
    %v1041 = vmul.f32 %v1008, %v970
    %v1042 = vsub.f32 1.0, %v1014
    %v1043 = vmul.f32 %v1042, %v971
    %v1044 = vadd.f32 %v1041, %v1043
    %v1045 = vmul.f32 %v1014, %v971
    %v1046 = vsub.f32 1.0, %v1020
    %v1047 = vmul.f32 %v1046, %v972
    %v1048 = vadd.f32 %v1045, %v1047
    %v1049 = vlaneseq
    %v1050 = vshrl.u32 %v1049, 7
    %v1051 = vsub.s32 1, %v1050
    %v1052 = vrot.slane %v883, %v1051
    %v1053 = vmul.f32 %v973, %v1052
    %v1054 = vlaneseq
    %v1055 = vshrl.u32 %v1054, 7
    %v1056 = vsub.s32 2, %v1055
    %v1057 = vrot.slane %v883, %v1056
    %v1058 = vmul.f32 %v979, %v1057
    %v1059 = vlaneseq
    %v1060 = vshrl.u32 %v1059, 7
    %v1061 = vsub.s32 3, %v1060
    %v1062 = vrot.slane %v883, %v1061
    %v1063 = vmul.f32 %v985, %v1062
    %v1064 = vlaneseq
    %v1065 = vshrl.u32 %v1064, 7
    %v1066 = vsub.s32 4, %v1065
    %v1067 = vrot.slane %v883, %v1066
    %v1068 = vmul.f32 %v991, %v1067
    %v1069 = vlaneseq
    %v1070 = vshrl.u32 %v1069, 7
    %v1071 = vsub.s32 5, %v1070
    %v1072 = vrot.slane %v883, %v1071
    %v1073 = vmul.f32 %v997, %v1072
    %v1074 = vlaneseq
    %v1075 = vshrl.u32 %v1074, 7
    %v1076 = vsub.s32 6, %v1075
    %v1077 = vrot.slane %v883, %v1076
    %v1078 = vmul.f32 %v1003, %v1077
    %v1079 = vlaneseq
    %v1080 = vshrl.u32 %v1079, 7
    %v1081 = vsub.s32 7, %v1080
    %v1082 = vrot.slane %v883, %v1081
    %v1083 = vmul.f32 %v1009, %v1082
    %v1084 = vmul.f32 %v1053, %v1024
    %v1085 = vsub.f32 1.0, %v1058
    %v1086 = vmul.f32 %v1085, %v1028
    %v1087 = vadd.f32 %v1084, %v1086
    %v1088 = vmul.f32 %v1058, %v1028
    %v1089 = vsub.f32 1.0, %v1063
    %v1090 = vmul.f32 %v1089, %v1032
    %v1091 = vadd.f32 %v1088, %v1090
    %v1092 = vmul.f32 %v1063, %v1032
    %v1093 = vsub.f32 1.0, %v1068
    %v1094 = vmul.f32 %v1093, %v1036
    %v1095 = vadd.f32 %v1092, %v1094
    %v1096 = vmul.f32 %v1068, %v1036
    %v1097 = vsub.f32 1.0, %v1073
    %v1098 = vmul.f32 %v1097, %v1040
    %v1099 = vadd.f32 %v1096, %v1098
    %v1100 = vmul.f32 %v1073, %v1040
    %v1101 = vsub.f32 1.0, %v1078
    %v1102 = vmul.f32 %v1101, %v1044
    %v1103 = vadd.f32 %v1100, %v1102
    %v1104 = vmul.f32 %v1078, %v1044
    %v1105 = vsub.f32 1.0, %v1083
    %v1106 = vmul.f32 %v1105, %v1048
    %v1107 = vadd.f32 %v1104, %v1106
    %v1108 = vld [vmem:[#allocation7 + $0x80] sm:$0xff]
    %v1109 = vld [vmem:[#allocation7 + $0x88] sm:$0xff]
    %v1110 = vld [vmem:[#allocation7 + $0x90] sm:$0xff]
    %v1111 = vld [vmem:[#allocation7 + $0x98] sm:$0xff]
    %v1112 = vld [vmem:[#allocation7 + $0xa0] sm:$0xff]
    %v1113 = vld [vmem:[#allocation7 + $0xa8] sm:$0xff]
    %v1114 = vld [vmem:[#allocation7 + $0xb0] sm:$0xff]
    %v1115 = vld [vmem:[#allocation7 + $0xb8] sm:$0xff]
    %v1116 = vld [vmem:[#allocation7 + $0xc0] sm:$0xff]
    %v1117 = vld [vmem:[#allocation7 + $0xc8] sm:$0xff]
    %v1118 = vld [vmem:[#allocation7 + $0xd0] sm:$0xff]
    %v1119 = vld [vmem:[#allocation7 + $0xd8] sm:$0xff]
    %v1120 = vld [vmem:[#allocation7 + $0xe0] sm:$0xff]
    %v1121 = vld [vmem:[#allocation7 + $0xe8] sm:$0xff]
    %v1122 = vld [vmem:[#allocation7 + $0xf0] sm:$0xff]
    %v1123 = vld [vmem:[#allocation7 + $0xf8] sm:$0xff]
    %1124 = vmatprep.subr.mxu0 0.0
    %1125 = vmatpush1.msra.mxu0 %v1108
    %1126 = vmatprep.subr.mxu0 0.0
    %1127 = vmatpush1.msra.mxu0 %v1109
    %1128 = vmatprep.subr.mxu0 0.0
    %1129 = vmatpush1.msra.mxu0 %v1110
    %1130 = vmatprep.subr.mxu0 0.0
    %1131 = vmatpush1.msra.mxu0 %v1111
    %1132 = vmatprep.subr.mxu0 0.0
    %1133 = vmatpush1.msra.mxu0 %v1112
    %1134 = vmatprep.subr.mxu0 0.0
    %1135 = vmatpush1.msra.mxu0 %v1113
    %1136 = vmatprep.subr.mxu0 0.0
    %1137 = vmatpush1.msra.mxu0 %v1114
    %1138 = vmatprep.subr.mxu0 0.0
    %1139 = vmatpush1.msra.mxu0 %v1115
    %1140 = vmatprep.subr.mxu0 0.0
    %1141 = vmatpush1.msra.mxu0 %v1116
    %1142 = vmatprep.subr.mxu0 0.0
    %1143 = vmatpush1.msra.mxu0 %v1117
    %1144 = vmatprep.subr.mxu0 0.0
    %1145 = vmatpush1.msra.mxu0 %v1118
    %1146 = vmatprep.subr.mxu0 0.0
    %1147 = vmatpush1.msra.mxu0 %v1119
    %1148 = vmatprep.subr.mxu0 0.0
    %1149 = vmatpush1.msra.mxu0 %v1120
    %1150 = vmatprep.subr.mxu0 0.0
    %1151 = vmatpush1.msra.mxu0 %v1121
    %1152 = vmatprep.subr.mxu0 0.0
    %1153 = vmatpush1.msra.mxu0 %v1122
    %1154 = vmatprep.subr.mxu0 0.0
    %1155 = vmatpush1.msra.mxu0 %v1123
    %1156 = vmatprep.subr.mxu0 0.0
    %1157 = vmatpush1.msra.mxu0 0.0
    %1158 = vmatprep.subr.mxu0 0.0
    %1159 = vmatpush1.msra.mxu0 0.0
    %1160 = vmatprep.subr.mxu0 0.0
    %1161 = vmatpush1.msra.mxu0 0.0
    %1162 = vmatprep.subr.mxu0 0.0
    %1163 = vmatpush1.msra.mxu0 0.0
    %1164 = vmatprep.subr.mxu0 0.0
    %1165 = vmatpush1.msra.mxu0 0.0
    %1166 = vmatprep.subr.mxu0 0.0
    %1167 = vmatpush1.msra.mxu0 0.0
    %1168 = vmatprep.subr.mxu0 0.0
    %1169 = vmatpush1.msra.mxu0 0.0
    %1170 = vmatprep.subr.mxu0 0.0
    %1171 = vmatpush1.msra.mxu0 0.0
    %1172 = vmatprep.subr.mxu0 0.0
    %1173 = vmatpush1.msra.mxu0 0.0
    %1174 = vmatprep.subr.mxu0 0.0
    %1175 = vmatpush1.msra.mxu0 0.0
    %1176 = vmatprep.subr.mxu0 0.0
    %1177 = vmatpush1.msra.mxu0 0.0
    %1178 = vmatprep.subr.mxu0 0.0
    %1179 = vmatpush1.msra.mxu0 0.0
    %1180 = vmatprep.subr.mxu0 0.0
    %1181 = vmatpush1.msra.mxu0 0.0
    %1182 = vmatprep.subr.mxu0 0.0
    %1183 = vmatpush1.msra.mxu0 0.0
    %1184 = vmatprep.subr.mxu0 0.0
    %1185 = vmatpush1.msra.mxu0 0.0
    %1186 = vmatprep.subr.mxu0 0.0
    %1187 = vmatpush1.msra.mxu0 0.0
    %1188 = vmatprep.mubr.f32.mxu0 0.0
    %1189 = vmatmul.mubr.f32.gmra.mrb[0].mxu0 %v1087
    %v1190 = vpop.f32.mrb[0].mxu0
    %v1191 = vadd.f32 0.0, %v1190
    %v1192 = vpop.f32.mrb[0].mxu0
    %1193 = vdwg.mxu0
    %1194 = vmatprep.subr.mxu0 0.0
    %1195 = vmatpush1.msra.mxu0 %v886
    %1196 = vmatprep.subr.mxu0 0.0
    %1197 = vmatpush1.msra.mxu0 %v887
    %1198 = vmatprep.subr.mxu0 0.0
    %1199 = vmatpush1.msra.mxu0 %v888
    %1200 = vmatprep.subr.mxu0 0.0
    %1201 = vmatpush1.msra.mxu0 %v889
    %1202 = vmatprep.subr.mxu0 0.0
    %1203 = vmatpush1.msra.mxu0 %v890
    %1204 = vmatprep.subr.mxu0 0.0
    %1205 = vmatpush1.msra.mxu0 %v891
    %1206 = vmatprep.subr.mxu0 0.0
    %1207 = vmatpush1.msra.mxu0 %v892
    %1208 = vmatprep.subr.mxu0 0.0
    %1209 = vmatpush1.msra.mxu0 %v893
    %1210 = vmatprep.subr.mxu0 0.0
    %1211 = vmatpush1.msra.mxu0 %v894
    %1212 = vmatprep.subr.mxu0 0.0
    %1213 = vmatpush1.msra.mxu0 %v895
    %1214 = vmatprep.subr.mxu0 0.0
    %1215 = vmatpush1.msra.mxu0 %v896
    %1216 = vmatprep.subr.mxu0 0.0
    %1217 = vmatpush1.msra.mxu0 %v897
    %1218 = vmatprep.subr.mxu0 0.0
    %1219 = vmatpush1.msra.mxu0 %v898
    %1220 = vmatprep.subr.mxu0 0.0
    %1221 = vmatpush1.msra.mxu0 %v899
    %1222 = vmatprep.subr.mxu0 0.0
    %1223 = vmatpush1.msra.mxu0 %v900
    %1224 = vmatprep.subr.mxu0 0.0
    %1225 = vmatpush1.msra.mxu0 %v901
    %1226 = vmatprep.subr.mxu0 0.0
    %1227 = vmatpush1.msra.mxu0 0.0
    %1228 = vmatprep.subr.mxu0 0.0
    %1229 = vmatpush1.msra.mxu0 0.0
    %1230 = vmatprep.subr.mxu0 0.0
    %1231 = vmatpush1.msra.mxu0 0.0
    %1232 = vmatprep.subr.mxu0 0.0
    %1233 = vmatpush1.msra.mxu0 0.0
    %1234 = vmatprep.subr.mxu0 0.0
    %1235 = vmatpush1.msra.mxu0 0.0
    %1236 = vmatprep.subr.mxu0 0.0
    %1237 = vmatpush1.msra.mxu0 0.0
    %1238 = vmatprep.subr.mxu0 0.0
    %1239 = vmatpush1.msra.mxu0 0.0
    %1240 = vmatprep.subr.mxu0 0.0
    %1241 = vmatpush1.msra.mxu0 0.0
    %1242 = vmatprep.subr.mxu0 0.0
    %1243 = vmatpush1.msra.mxu0 0.0
    %1244 = vmatprep.subr.mxu0 0.0
    %1245 = vmatpush1.msra.mxu0 0.0
    %1246 = vmatprep.subr.mxu0 0.0
    %1247 = vmatpush1.msra.mxu0 0.0
    %1248 = vmatprep.subr.mxu0 0.0
    %1249 = vmatpush1.msra.mxu0 0.0
    %1250 = vmatprep.subr.mxu0 0.0
    %1251 = vmatpush1.msra.mxu0 0.0
    %1252 = vmatprep.subr.mxu0 0.0
    %1253 = vmatpush1.msra.mxu0 0.0
    %1254 = vmatprep.subr.mxu0 0.0
    %1255 = vmatpush1.msra.mxu0 0.0
    %1256 = vmatprep.subr.mxu0 0.0
    %1257 = vmatpush1.msra.mxu0 0.0
    %1258 = vmatprep.mubr.f32.mxu0 0.0
    %1259 = vmatmul.mubr.f32.gmra.mrb[0].mxu0 %v885
    %v1260 = vpop.f32.mrb[0].mxu0
    %v1261 = vadd.f32 %v1191, %v1260
    %v1262 = vpop.f32.mrb[0].mxu0
    %1263 = vdwg.mxu0
    %v1264 = vld [vmem:[#allocation7 + $0x100] sm:$0xff]
    %v1265 = vld [vmem:[#allocation7 + $0x108] sm:$0xff]
    %v1266 = vld [vmem:[#allocation7 + $0x110] sm:$0xff]
    %v1267 = vld [vmem:[#allocation7 + $0x118] sm:$0xff]
    %v1268 = vld [vmem:[#allocation7 + $0x120] sm:$0xff]
    %v1269 = vld [vmem:[#allocation7 + $0x128] sm:$0xff]
    %v1270 = vld [vmem:[#allocation7 + $0x130] sm:$0xff]
    %v1271 = vld [vmem:[#allocation7 + $0x138] sm:$0xff]
    %v1272 = vld [vmem:[#allocation7 + $0x140] sm:$0xff]
    %v1273 = vld [vmem:[#allocation7 + $0x148] sm:$0xff]
    %v1274 = vld [vmem:[#allocation7 + $0x150] sm:$0xff]
    %v1275 = vld [vmem:[#allocation7 + $0x158] sm:$0xff]
    %v1276 = vld [vmem:[#allocation7 + $0x160] sm:$0xff]
    %v1277 = vld [vmem:[#allocation7 + $0x168] sm:$0xff]
    %v1278 = vld [vmem:[#allocation7 + $0x170] sm:$0xff]
    %v1279 = vld [vmem:[#allocation7 + $0x178] sm:$0xff]
    %1280 = vmatprep.subr.mxu0 0.0
    %1281 = vmatpush1.msra.mxu0 %v1264
    %1282 = vmatprep.subr.mxu0 0.0
    %1283 = vmatpush1.msra.mxu0 %v1265
    %1284 = vmatprep.subr.mxu0 0.0
    %1285 = vmatpush1.msra.mxu0 %v1266
    %1286 = vmatprep.subr.mxu0 0.0
    %1287 = vmatpush1.msra.mxu0 %v1267
    %1288 = vmatprep.subr.mxu0 0.0
    %1289 = vmatpush1.msra.mxu0 %v1268
    %1290 = vmatprep.subr.mxu0 0.0
    %1291 = vmatpush1.msra.mxu0 %v1269
    %1292 = vmatprep.subr.mxu0 0.0
    %1293 = vmatpush1.msra.mxu0 %v1270
    %1294 = vmatprep.subr.mxu0 0.0
    %1295 = vmatpush1.msra.mxu0 %v1271
    %1296 = vmatprep.subr.mxu0 0.0
    %1297 = vmatpush1.msra.mxu0 %v1272
    %1298 = vmatprep.subr.mxu0 0.0
    %1299 = vmatpush1.msra.mxu0 %v1273
    %1300 = vmatprep.subr.mxu0 0.0
    %1301 = vmatpush1.msra.mxu0 %v1274
    %1302 = vmatprep.subr.mxu0 0.0
    %1303 = vmatpush1.msra.mxu0 %v1275
    %1304 = vmatprep.subr.mxu0 0.0
    %1305 = vmatpush1.msra.mxu0 %v1276
    %1306 = vmatprep.subr.mxu0 0.0
    %1307 = vmatpush1.msra.mxu0 %v1277
    %1308 = vmatprep.subr.mxu0 0.0
    %1309 = vmatpush1.msra.mxu0 %v1278
    %1310 = vmatprep.subr.mxu0 0.0
    %1311 = vmatpush1.msra.mxu0 %v1279
    %1312 = vmatprep.subr.mxu0 0.0
    %1313 = vmatpush1.msra.mxu0 0.0
    %1314 = vmatprep.subr.mxu0 0.0
    %1315 = vmatpush1.msra.mxu0 0.0
    %1316 = vmatprep.subr.mxu0 0.0
    %1317 = vmatpush1.msra.mxu0 0.0
    %1318 = vmatprep.subr.mxu0 0.0
    %1319 = vmatpush1.msra.mxu0 0.0
    %1320 = vmatprep.subr.mxu0 0.0
    %1321 = vmatpush1.msra.mxu0 0.0
    %1322 = vmatprep.subr.mxu0 0.0
    %1323 = vmatpush1.msra.mxu0 0.0
    %1324 = vmatprep.subr.mxu0 0.0
    %1325 = vmatpush1.msra.mxu0 0.0
    %1326 = vmatprep.subr.mxu0 0.0
    %1327 = vmatpush1.msra.mxu0 0.0
    %1328 = vmatprep.subr.mxu0 0.0
    %1329 = vmatpush1.msra.mxu0 0.0
    %1330 = vmatprep.subr.mxu0 0.0
    %1331 = vmatpush1.msra.mxu0 0.0
    %1332 = vmatprep.subr.mxu0 0.0
    %1333 = vmatpush1.msra.mxu0 0.0
    %1334 = vmatprep.subr.mxu0 0.0
    %1335 = vmatpush1.msra.mxu0 0.0
    %1336 = vmatprep.subr.mxu0 0.0
    %1337 = vmatpush1.msra.mxu0 0.0
    %1338 = vmatprep.subr.mxu0 0.0
    %1339 = vmatpush1.msra.mxu0 0.0
    %1340 = vmatprep.subr.mxu0 0.0
    %1341 = vmatpush1.msra.mxu0 0.0
    %1342 = vmatprep.subr.mxu0 0.0
    %1343 = vmatpush1.msra.mxu0 0.0
    %1344 = vmatprep.mubr.f32.mxu0 0.0
    %1345 = vmatmul.mubr.f32.gmra.mrb[0].mxu0 %v1091
    %v1346 = vpop.f32.mrb[0].mxu0
    %v1347 = vadd.f32 0.0, %v1346
    %v1348 = vpop.f32.mrb[0].mxu0
    %1349 = vdwg.mxu0
    %v1350 = vadd.f32 %v1261, %v1347
    %v1351 = vld [vmem:[#allocation7 + $0x180] sm:$0xff]
    %v1352 = vld [vmem:[#allocation7 + $0x188] sm:$0xff]
    %v1353 = vld [vmem:[#allocation7 + $0x190] sm:$0xff]
    %v1354 = vld [vmem:[#allocation7 + $0x198] sm:$0xff]
    %v1355 = vld [vmem:[#allocation7 + $0x1a0] sm:$0xff]
    %v1356 = vld [vmem:[#allocation7 + $0x1a8] sm:$0xff]
    %v1357 = vld [vmem:[#allocation7 + $0x1b0] sm:$0xff]
    %v1358 = vld [vmem:[#allocation7 + $0x1b8] sm:$0xff]
    %v1359 = vld [vmem:[#allocation7 + $0x1c0] sm:$0xff]
    %v1360 = vld [vmem:[#allocation7 + $0x1c8] sm:$0xff]
    %v1361 = vld [vmem:[#allocation7 + $0x1d0] sm:$0xff]
    %v1362 = vld [vmem:[#allocation7 + $0x1d8] sm:$0xff]
    %v1363 = vld [vmem:[#allocation7 + $0x1e0] sm:$0xff]
    %v1364 = vld [vmem:[#allocation7 + $0x1e8] sm:$0xff]
    %v1365 = vld [vmem:[#allocation7 + $0x1f0] sm:$0xff]
    %v1366 = vld [vmem:[#allocation7 + $0x1f8] sm:$0xff]
    %1367 = vmatprep.subr.mxu0 0.0
    %1368 = vmatpush1.msra.mxu0 %v1351
    %1369 = vmatprep.subr.mxu0 0.0
    %1370 = vmatpush1.msra.mxu0 %v1352
    %1371 = vmatprep.subr.mxu0 0.0
    %1372 = vmatpush1.msra.mxu0 %v1353
    %1373 = vmatprep.subr.mxu0 0.0
    %1374 = vmatpush1.msra.mxu0 %v1354
    %1375 = vmatprep.subr.mxu0 0.0
    %1376 = vmatpush1.msra.mxu0 %v1355
    %1377 = vmatprep.subr.mxu0 0.0
    %1378 = vmatpush1.msra.mxu0 %v1356
    %1379 = vmatprep.subr.mxu0 0.0
    %1380 = vmatpush1.msra.mxu0 %v1357
    %1381 = vmatprep.subr.mxu0 0.0
    %1382 = vmatpush1.msra.mxu0 %v1358
    %1383 = vmatprep.subr.mxu0 0.0
    %1384 = vmatpush1.msra.mxu0 %v1359
    %1385 = vmatprep.subr.mxu0 0.0
    %1386 = vmatpush1.msra.mxu0 %v1360
    %1387 = vmatprep.subr.mxu0 0.0
    %1388 = vmatpush1.msra.mxu0 %v1361
    %1389 = vmatprep.subr.mxu0 0.0
    %1390 = vmatpush1.msra.mxu0 %v1362
    %1391 = vmatprep.subr.mxu0 0.0
    %1392 = vmatpush1.msra.mxu0 %v1363
    %1393 = vmatprep.subr.mxu0 0.0
    %1394 = vmatpush1.msra.mxu0 %v1364
    %1395 = vmatprep.subr.mxu0 0.0
    %1396 = vmatpush1.msra.mxu0 %v1365
    %1397 = vmatprep.subr.mxu0 0.0
    %1398 = vmatpush1.msra.mxu0 %v1366
    %1399 = vmatprep.subr.mxu0 0.0
    %1400 = vmatpush1.msra.mxu0 0.0
    %1401 = vmatprep.subr.mxu0 0.0
    %1402 = vmatpush1.msra.mxu0 0.0
    %1403 = vmatprep.subr.mxu0 0.0
    %1404 = vmatpush1.msra.mxu0 0.0
    %1405 = vmatprep.subr.mxu0 0.0
    %1406 = vmatpush1.msra.mxu0 0.0
    %1407 = vmatprep.subr.mxu0 0.0
    %1408 = vmatpush1.msra.mxu0 0.0
    %1409 = vmatprep.subr.mxu0 0.0
    %1410 = vmatpush1.msra.mxu0 0.0
    %1411 = vmatprep.subr.mxu0 0.0
    %1412 = vmatpush1.msra.mxu0 0.0
    %1413 = vmatprep.subr.mxu0 0.0
    %1414 = vmatpush1.msra.mxu0 0.0
    %1415 = vmatprep.subr.mxu0 0.0
    %1416 = vmatpush1.msra.mxu0 0.0
    %1417 = vmatprep.subr.mxu0 0.0
    %1418 = vmatpush1.msra.mxu0 0.0
    %1419 = vmatprep.subr.mxu0 0.0
    %1420 = vmatpush1.msra.mxu0 0.0
    %1421 = vmatprep.subr.mxu0 0.0
    %1422 = vmatpush1.msra.mxu0 0.0
    %1423 = vmatprep.subr.mxu0 0.0
    %1424 = vmatpush1.msra.mxu0 0.0
    %1425 = vmatprep.subr.mxu0 0.0
    %1426 = vmatpush1.msra.mxu0 0.0
    %1427 = vmatprep.subr.mxu0 0.0
    %1428 = vmatpush1.msra.mxu0 0.0
    %1429 = vmatprep.subr.mxu0 0.0
    %1430 = vmatpush1.msra.mxu0 0.0
    %1431 = vmatprep.mubr.f32.mxu0 0.0
    %1432 = vmatmul.mubr.f32.gmra.mrb[0].mxu0 %v1095
    %v1433 = vpop.f32.mrb[0].mxu0
    %v1434 = vadd.f32 0.0, %v1433
    %v1435 = vpop.f32.mrb[0].mxu0
    %1436 = vdwg.mxu0
    %v1437 = vadd.f32 %v1350, %v1434
    %v1438 = vld [vmem:[#allocation7 + $0x200] sm:$0xff]
    %v1439 = vld [vmem:[#allocation7 + $0x208] sm:$0xff]
    %v1440 = vld [vmem:[#allocation7 + $0x210] sm:$0xff]
    %v1441 = vld [vmem:[#allocation7 + $0x218] sm:$0xff]
    %v1442 = vld [vmem:[#allocation7 + $0x220] sm:$0xff]
    %v1443 = vld [vmem:[#allocation7 + $0x228] sm:$0xff]
    %v1444 = vld [vmem:[#allocation7 + $0x230] sm:$0xff]
    %v1445 = vld [vmem:[#allocation7 + $0x238] sm:$0xff]
    %v1446 = vld [vmem:[#allocation7 + $0x240] sm:$0xff]
    %v1447 = vld [vmem:[#allocation7 + $0x248] sm:$0xff]
    %v1448 = vld [vmem:[#allocation7 + $0x250] sm:$0xff]
    %v1449 = vld [vmem:[#allocation7 + $0x258] sm:$0xff]
    %v1450 = vld [vmem:[#allocation7 + $0x260] sm:$0xff]
    %v1451 = vld [vmem:[#allocation7 + $0x268] sm:$0xff]
    %v1452 = vld [vmem:[#allocation7 + $0x270] sm:$0xff]
    %v1453 = vld [vmem:[#allocation7 + $0x278] sm:$0xff]
    %1454 = vmatprep.subr.mxu0 0.0
    %1455 = vmatpush1.msra.mxu0 %v1438
    %1456 = vmatprep.subr.mxu0 0.0
    %1457 = vmatpush1.msra.mxu0 %v1439
    %1458 = vmatprep.subr.mxu0 0.0
    %1459 = vmatpush1.msra.mxu0 %v1440
    %1460 = vmatprep.subr.mxu0 0.0
    %1461 = vmatpush1.msra.mxu0 %v1441
    %1462 = vmatprep.subr.mxu0 0.0
    %1463 = vmatpush1.msra.mxu0 %v1442
    %1464 = vmatprep.subr.mxu0 0.0
    %1465 = vmatpush1.msra.mxu0 %v1443
    %1466 = vmatprep.subr.mxu0 0.0
    %1467 = vmatpush1.msra.mxu0 %v1444
    %1468 = vmatprep.subr.mxu0 0.0
    %1469 = vmatpush1.msra.mxu0 %v1445
    %1470 = vmatprep.subr.mxu0 0.0
    %1471 = vmatpush1.msra.mxu0 %v1446
    %1472 = vmatprep.subr.mxu0 0.0
    %1473 = vmatpush1.msra.mxu0 %v1447
    %1474 = vmatprep.subr.mxu0 0.0
    %1475 = vmatpush1.msra.mxu0 %v1448
    %1476 = vmatprep.subr.mxu0 0.0
    %1477 = vmatpush1.msra.mxu0 %v1449
    %1478 = vmatprep.subr.mxu0 0.0
    %1479 = vmatpush1.msra.mxu0 %v1450
    %1480 = vmatprep.subr.mxu0 0.0
    %1481 = vmatpush1.msra.mxu0 %v1451
    %1482 = vmatprep.subr.mxu0 0.0
    %1483 = vmatpush1.msra.mxu0 %v1452
    %1484 = vmatprep.subr.mxu0 0.0
    %1485 = vmatpush1.msra.mxu0 %v1453
    %1486 = vmatprep.subr.mxu0 0.0
    %1487 = vmatpush1.msra.mxu0 0.0
    %1488 = vmatprep.subr.mxu0 0.0
    %1489 = vmatpush1.msra.mxu0 0.0
    %1490 = vmatprep.subr.mxu0 0.0
    %1491 = vmatpush1.msra.mxu0 0.0
    %1492 = vmatprep.subr.mxu0 0.0
    %1493 = vmatpush1.msra.mxu0 0.0
    %1494 = vmatprep.subr.mxu0 0.0
    %1495 = vmatpush1.msra.mxu0 0.0
    %1496 = vmatprep.subr.mxu0 0.0
    %1497 = vmatpush1.msra.mxu0 0.0
    %1498 = vmatprep.subr.mxu0 0.0
    %1499 = vmatpush1.msra.mxu0 0.0
    %1500 = vmatprep.subr.mxu0 0.0
    %1501 = vmatpush1.msra.mxu0 0.0
    %1502 = vmatprep.subr.mxu0 0.0
    %1503 = vmatpush1.msra.mxu0 0.0
    %1504 = vmatprep.subr.mxu0 0.0
    %1505 = vmatpush1.msra.mxu0 0.0
    %1506 = vmatprep.subr.mxu0 0.0
    %1507 = vmatpush1.msra.mxu0 0.0
    %1508 = vmatprep.subr.mxu0 0.0
    %1509 = vmatpush1.msra.mxu0 0.0
    %1510 = vmatprep.subr.mxu0 0.0
    %1511 = vmatpush1.msra.mxu0 0.0
    %1512 = vmatprep.subr.mxu0 0.0
    %1513 = vmatpush1.msra.mxu0 0.0
    %1514 = vmatprep.subr.mxu0 0.0
    %1515 = vmatpush1.msra.mxu0 0.0
    %1516 = vmatprep.subr.mxu0 0.0
    %1517 = vmatpush1.msra.mxu0 0.0
    %1518 = vmatprep.mubr.f32.mxu0 0.0
    %1519 = vmatmul.mubr.f32.gmra.mrb[0].mxu0 %v1099
    %v1520 = vpop.f32.mrb[0].mxu0
    %v1521 = vadd.f32 0.0, %v1520
    %v1522 = vpop.f32.mrb[0].mxu0
    %1523 = vdwg.mxu0
    %v1524 = vadd.f32 %v1437, %v1521
    %v1525 = vld [vmem:[#allocation7 + $0x280] sm:$0xff]
    %v1526 = vld [vmem:[#allocation7 + $0x288] sm:$0xff]
    %v1527 = vld [vmem:[#allocation7 + $0x290] sm:$0xff]
    %v1528 = vld [vmem:[#allocation7 + $0x298] sm:$0xff]
    %v1529 = vld [vmem:[#allocation7 + $0x2a0] sm:$0xff]
    %v1530 = vld [vmem:[#allocation7 + $0x2a8] sm:$0xff]
    %v1531 = vld [vmem:[#allocation7 + $0x2b0] sm:$0xff]
    %v1532 = vld [vmem:[#allocation7 + $0x2b8] sm:$0xff]
    %v1533 = vld [vmem:[#allocation7 + $0x2c0] sm:$0xff]
    %v1534 = vld [vmem:[#allocation7 + $0x2c8] sm:$0xff]
    %v1535 = vld [vmem:[#allocation7 + $0x2d0] sm:$0xff]
    %v1536 = vld [vmem:[#allocation7 + $0x2d8] sm:$0xff]
    %v1537 = vld [vmem:[#allocation7 + $0x2e0] sm:$0xff]
    %v1538 = vld [vmem:[#allocation7 + $0x2e8] sm:$0xff]
    %v1539 = vld [vmem:[#allocation7 + $0x2f0] sm:$0xff]
    %v1540 = vld [vmem:[#allocation7 + $0x2f8] sm:$0xff]
    %1541 = vmatprep.subr.mxu0 0.0
    %1542 = vmatpush1.msra.mxu0 %v1525
    %1543 = vmatprep.subr.mxu0 0.0
    %1544 = vmatpush1.msra.mxu0 %v1526
    %1545 = vmatprep.subr.mxu0 0.0
    %1546 = vmatpush1.msra.mxu0 %v1527
    %1547 = vmatprep.subr.mxu0 0.0
    %1548 = vmatpush1.msra.mxu0 %v1528
    %1549 = vmatprep.subr.mxu0 0.0
    %1550 = vmatpush1.msra.mxu0 %v1529
    %1551 = vmatprep.subr.mxu0 0.0
    %1552 = vmatpush1.msra.mxu0 %v1530
    %1553 = vmatprep.subr.mxu0 0.0
    %1554 = vmatpush1.msra.mxu0 %v1531
    %1555 = vmatprep.subr.mxu0 0.0
    %1556 = vmatpush1.msra.mxu0 %v1532
    %1557 = vmatprep.subr.mxu0 0.0
    %1558 = vmatpush1.msra.mxu0 %v1533
    %1559 = vmatprep.subr.mxu0 0.0
    %1560 = vmatpush1.msra.mxu0 %v1534
    %1561 = vmatprep.subr.mxu0 0.0
    %1562 = vmatpush1.msra.mxu0 %v1535
    %1563 = vmatprep.subr.mxu0 0.0
    %1564 = vmatpush1.msra.mxu0 %v1536
    %1565 = vmatprep.subr.mxu0 0.0
    %1566 = vmatpush1.msra.mxu0 %v1537
    %1567 = vmatprep.subr.mxu0 0.0
    %1568 = vmatpush1.msra.mxu0 %v1538
    %1569 = vmatprep.subr.mxu0 0.0
    %1570 = vmatpush1.msra.mxu0 %v1539
    %1571 = vmatprep.subr.mxu0 0.0
    %1572 = vmatpush1.msra.mxu0 %v1540
    %1573 = vmatprep.subr.mxu0 0.0
    %1574 = vmatpush1.msra.mxu0 0.0
    %1575 = vmatprep.subr.mxu0 0.0
    %1576 = vmatpush1.msra.mxu0 0.0
    %1577 = vmatprep.subr.mxu0 0.0
    %1578 = vmatpush1.msra.mxu0 0.0
    %1579 = vmatprep.subr.mxu0 0.0
    %1580 = vmatpush1.msra.mxu0 0.0
    %1581 = vmatprep.subr.mxu0 0.0
    %1582 = vmatpush1.msra.mxu0 0.0
    %1583 = vmatprep.subr.mxu0 0.0
    %1584 = vmatpush1.msra.mxu0 0.0
    %1585 = vmatprep.subr.mxu0 0.0
    %1586 = vmatpush1.msra.mxu0 0.0
    %1587 = vmatprep.subr.mxu0 0.0
    %1588 = vmatpush1.msra.mxu0 0.0
    %1589 = vmatprep.subr.mxu0 0.0
    %1590 = vmatpush1.msra.mxu0 0.0
    %1591 = vmatprep.subr.mxu0 0.0
    %1592 = vmatpush1.msra.mxu0 0.0
    %1593 = vmatprep.subr.mxu0 0.0
    %1594 = vmatpush1.msra.mxu0 0.0
    %1595 = vmatprep.subr.mxu0 0.0
    %1596 = vmatpush1.msra.mxu0 0.0
    %1597 = vmatprep.subr.mxu0 0.0
    %1598 = vmatpush1.msra.mxu0 0.0
    %1599 = vmatprep.subr.mxu0 0.0
    %1600 = vmatpush1.msra.mxu0 0.0
    %1601 = vmatprep.subr.mxu0 0.0
    %1602 = vmatpush1.msra.mxu0 0.0
    %1603 = vmatprep.subr.mxu0 0.0
    %1604 = vmatpush1.msra.mxu0 0.0
    %1605 = vmatprep.mubr.f32.mxu0 0.0
    %1606 = vmatmul.mubr.f32.gmra.mrb[0].mxu0 %v1103
    %v1607 = vpop.f32.mrb[0].mxu0
    %v1608 = vadd.f32 0.0, %v1607
    %v1609 = vpop.f32.mrb[0].mxu0
    %1610 = vdwg.mxu0
    %v1611 = vadd.f32 %v1524, %v1608
    %v1612 = vld [vmem:[#allocation7 + $0x300] sm:$0xff]
    %v1613 = vld [vmem:[#allocation7 + $0x308] sm:$0xff]
    %v1614 = vld [vmem:[#allocation7 + $0x310] sm:$0xff]
    %v1615 = vld [vmem:[#allocation7 + $0x318] sm:$0xff]
    %v1616 = vld [vmem:[#allocation7 + $0x320] sm:$0xff]
    %v1617 = vld [vmem:[#allocation7 + $0x328] sm:$0xff]
    %v1618 = vld [vmem:[#allocation7 + $0x330] sm:$0xff]
    %v1619 = vld [vmem:[#allocation7 + $0x338] sm:$0xff]
    %v1620 = vld [vmem:[#allocation7 + $0x340] sm:$0xff]
    %v1621 = vld [vmem:[#allocation7 + $0x348] sm:$0xff]
    %v1622 = vld [vmem:[#allocation7 + $0x350] sm:$0xff]
    %v1623 = vld [vmem:[#allocation7 + $0x358] sm:$0xff]
    %v1624 = vld [vmem:[#allocation7 + $0x360] sm:$0xff]
    %v1625 = vld [vmem:[#allocation7 + $0x368] sm:$0xff]
    %v1626 = vld [vmem:[#allocation7 + $0x370] sm:$0xff]
    %v1627 = vld [vmem:[#allocation7 + $0x378] sm:$0xff]
    %1628 = vmatprep.subr.mxu0 0.0
    %1629 = vmatpush1.msra.mxu0 %v1612
    %1630 = vmatprep.subr.mxu0 0.0
    %1631 = vmatpush1.msra.mxu0 %v1613
    %1632 = vmatprep.subr.mxu0 0.0
    %1633 = vmatpush1.msra.mxu0 %v1614
    %1634 = vmatprep.subr.mxu0 0.0
    %1635 = vmatpush1.msra.mxu0 %v1615
    %1636 = vmatprep.subr.mxu0 0.0
    %1637 = vmatpush1.msra.mxu0 %v1616
    %1638 = vmatprep.subr.mxu0 0.0
    %1639 = vmatpush1.msra.mxu0 %v1617
    %1640 = vmatprep.subr.mxu0 0.0
    %1641 = vmatpush1.msra.mxu0 %v1618
    %1642 = vmatprep.subr.mxu0 0.0
    %1643 = vmatpush1.msra.mxu0 %v1619
    %1644 = vmatprep.subr.mxu0 0.0
    %1645 = vmatpush1.msra.mxu0 %v1620
    %1646 = vmatprep.subr.mxu0 0.0
    %1647 = vmatpush1.msra.mxu0 %v1621
    %1648 = vmatprep.subr.mxu0 0.0
    %1649 = vmatpush1.msra.mxu0 %v1622
    %1650 = vmatprep.subr.mxu0 0.0
    %1651 = vmatpush1.msra.mxu0 %v1623
    %1652 = vmatprep.subr.mxu0 0.0
    %1653 = vmatpush1.msra.mxu0 %v1624
    %1654 = vmatprep.subr.mxu0 0.0
    %1655 = vmatpush1.msra.mxu0 %v1625
    %1656 = vmatprep.subr.mxu0 0.0
    %1657 = vmatpush1.msra.mxu0 %v1626
    %1658 = vmatprep.subr.mxu0 0.0
    %1659 = vmatpush1.msra.mxu0 %v1627
    %1660 = vmatprep.subr.mxu0 0.0
    %1661 = vmatpush1.msra.mxu0 0.0
    %1662 = vmatprep.subr.mxu0 0.0
    %1663 = vmatpush1.msra.mxu0 0.0
    %1664 = vmatprep.subr.mxu0 0.0
    %1665 = vmatpush1.msra.mxu0 0.0
    %1666 = vmatprep.subr.mxu0 0.0
    %1667 = vmatpush1.msra.mxu0 0.0
    %1668 = vmatprep.subr.mxu0 0.0
    %1669 = vmatpush1.msra.mxu0 0.0
    %1670 = vmatprep.subr.mxu0 0.0
    %1671 = vmatpush1.msra.mxu0 0.0
    %1672 = vmatprep.subr.mxu0 0.0
    %1673 = vmatpush1.msra.mxu0 0.0
    %1674 = vmatprep.subr.mxu0 0.0
    %1675 = vmatpush1.msra.mxu0 0.0
    %1676 = vmatprep.subr.mxu0 0.0
    %1677 = vmatpush1.msra.mxu0 0.0
    %1678 = vmatprep.subr.mxu0 0.0
    %1679 = vmatpush1.msra.mxu0 0.0
    %1680 = vmatprep.subr.mxu0 0.0
    %1681 = vmatpush1.msra.mxu0 0.0
    %1682 = vmatprep.subr.mxu0 0.0
    %1683 = vmatpush1.msra.mxu0 0.0
    %1684 = vmatprep.subr.mxu0 0.0
    %1685 = vmatpush1.msra.mxu0 0.0
    %1686 = vmatprep.subr.mxu0 0.0
    %1687 = vmatpush1.msra.mxu0 0.0
    %1688 = vmatprep.subr.mxu0 0.0
    %1689 = vmatpush1.msra.mxu0 0.0
    %1690 = vmatprep.subr.mxu0 0.0
    %1691 = vmatpush1.msra.mxu0 0.0
    %1692 = vmatprep.mubr.f32.mxu0 0.0
    %1693 = vmatmul.mubr.f32.gmra.mrb[0].mxu0 %v1107
    %v1694 = vpop.f32.mrb[0].mxu0
    %v1695 = vadd.f32 0.0, %v1694
    %v1696 = vpop.f32.mrb[0].mxu0
    %1697 = vdwg.mxu0
    %v1698 = vadd.f32 %v1611, %v1695
    %1699 = vst [vmem:[#allocation8] sm:$0xff] %v1698
    // Predicated region
    $region34: #{kan_forward.1} parent=1 // pred_check
      _
    $region35: #{kan_forward.1} parent=1 // pred_check_branch
      %1701 = sbr.rel (0) target = $region37
    $region36: #{kan_forward.1} parent=1 // pred_region
      %s1703 = ssub.s32 128, 128
      %1704 = vsyncadd [#allocation4], %s1703
      %s1706 = sshll.u32 [#allocation8], 4
      %s1707 = int_to_ptr.vmem [resolvable:$true] %s1706
      %1709 = dma.vmem_to_hbm [thread:$0]  %s1707, 128, %s5, [#allocation4]
    $region37: #{kan_forward.1} parent=1 // pred_fallthru
      _
    // Predicated region
    $region38: #{kan_forward.1} parent=1 // pred_check
      _
    $region39: #{kan_forward.1} parent=1 // pred_check_branch
      %1711 = sbr.rel (0) target = $region41
    $region40: #{kan_forward.1} parent=1 // pred_region
      %1712 = dma.done [#allocation4], 128
    $region41: #{kan_forward.1} parent=1 // pred_fallthru
      _
    %1713 = vsyncpa [#allocation3], 1
    %1714 = vsyncpa [#allocation6], 1
    %1715 = vsyncpa [#allocation4], 1

</llo_original>
